<compile_context>
chip_gen: v6e
topology: v6e:2x2x1
jax: 0.10.0
libtpu: 0.0.40
codegen_flags: <defaults>
</compile_context>

<pallas_src>
import functools
import math

import jax
import jax.numpy as jnp
from jax.experimental import pallas as pl
from jax.experimental.pallas import tpu as pltpu

INPUT_N = 3
H_N = 20
N_HIDDEN = 8  # number of Linear(h_n, h_n) layers in the Sequential
LAYER_DIMS = [(INPUT_N, H_N)] + [(H_N, H_N)] * N_HIDDEN + [(H_N, 1)]
N_LAYERS = len(LAYER_DIMS)  # 10 Linear layers, Swish after all but the last

# MACs per point: 3*20 + 8*20*20 + 20*1 = 3280
_MACS_PER_POINT = INPUT_N * H_N + N_HIDDEN * H_N * H_N + H_N


def _swish(h):
    # x * sigmoid(x) == 0.5 * x * (1 + tanh(x/2)); tanh is a single EUP op.
    return 0.5 * h * (1.0 + jnp.tanh(0.5 * h))


def _mlp_kernel(x_ref, w_in_ref, b_in_ref, w_hid_ref, b_hid_ref,
                w_out_ref, b_out_ref, out_ref, *, chunk_n):
    """Activations are (features, lanes): batch dim on lanes (lane-dense).

    The (features, tile_n) DMA'd tile is processed in `chunk_n`-lane sub-chunks
    so the full layer chain stays register-resident per chunk.
    """
    tile_n = x_ref.shape[1]
    n_chunks = tile_n // chunk_n  # static

    @pl.loop(0, n_chunks)
    def _(c):
        start = pl.multiple_of(c * chunk_n, chunk_n)

        # Input layer: (20,3)bf16 @ (3,chunk)bf16 -> f32 acc, + (20,1) bias.
        h = x_ref[:, pl.ds(start, chunk_n)].astype(jnp.bfloat16)
        h = jnp.dot(w_in_ref[...], h,
                    preferred_element_type=jnp.float32) + b_in_ref[...]
        h = _swish(h)

        # Hidden layers, statically unrolled inside the chunk loop.
        for li in range(N_HIDDEN):
            hb = h.astype(jnp.bfloat16)
            h = jnp.dot(w_hid_ref[li], hb,
                        preferred_element_type=jnp.float32) + b_hid_ref[li]
            h = _swish(h)

        # Output layer: (1,20)bf16 @ (20,chunk)bf16 -> lane-dense (1, chunk).
        hb = h.astype(jnp.bfloat16)
        out = jnp.dot(w_out_ref[...], hb,
                      preferred_element_type=jnp.float32) + b_out_ref[...]
        out_ref[:, pl.ds(start, chunk_n)] = out.astype(out_ref.dtype)


def _round_up(x, m):
    return ((x + m - 1) // m) * m


def _choose_tile_n(n, *, tile_n_max, chunk_n, min_blocks=2):
    """Largest tile (<= tile_n_max, multiple of chunk_n) that still leaves at
    least `min_blocks` grid steps so both v7x TensorCores get work."""
    tile_n_max = max(chunk_n, (tile_n_max // chunk_n) * chunk_n)
    target = _round_up(max(pl.cdiv(n, min_blocks), chunk_n), chunk_n)
    return min(tile_n_max, target)


def pinn_v_forward(x, packed_params, *, tile_n_max=8192, chunk_n=512):
    """x: (N, 3) f32.  packed_params = (w_in, b_in, w_hid, b_hid, w_out, b_out)
    with PyTorch (out_features, in_features) weight layout; weights bf16,
    biases f32 (see pack_params)."""
    w_in, b_in, w_hid, b_hid, w_out, b_out = packed_params
    N = x.shape[0]

    tile_n = _choose_tile_n(N, tile_n_max=tile_n_max, chunk_n=chunk_n)
    n_blocks = pl.cdiv(N, tile_n)
    n_pad = n_blocks * tile_n

    xT = x.T.astype(jnp.float32)                             # (3, N)
    if n_pad != N:
        xT = jnp.pad(xT, ((0, 0), (0, n_pad - N)))           # (3, N_pad)

    # Constant parameters: whole arrays resident in VMEM, no per-step DMA.
    param_spec = pl.BlockSpec(memory_space=pltpu.MemorySpace.VMEM)

    in_specs = [
        pl.BlockSpec((INPUT_N, tile_n), lambda i: (0, i)),   # x.T column tile
        param_spec,  # w_in  (20, 3)   bf16
        param_spec,  # b_in  (20, 1)   f32
        param_spec,  # w_hid (8,20,20) bf16
        param_spec,  # b_hid (8,20,1)  f32
        param_spec,  # w_out (1, 20)   bf16
        param_spec,  # b_out (1, 1)    f32
    ]
    out_specs = pl.BlockSpec((1, tile_n), lambda i: (0, i))  # lane-dense output

    cost = pl.CostEstimate(
        flops=2 * _MACS_PER_POINT * n_pad,
        transcendentals=(N_HIDDEN + 1) * H_N * n_pad,        # one tanh/unit/layer
        bytes_accessed=(INPUT_N + 1) * 4 * n_pad,            # 12 B in + 4 B out
    )

    out = pl.pallas_call(
        functools.partial(_mlp_kernel, chunk_n=chunk_n),
        out_shape=jax.ShapeDtypeStruct((1, n_pad), jnp.float32),
        grid_spec=pltpu.PrefetchScalarGridSpec(
            num_scalar_prefetch=0,
            grid=(n_blocks,),
            in_specs=in_specs,
            out_specs=out_specs,
        ),
        compiler_params=pltpu.CompilerParams(
            dimension_semantics=("parallel",),
        ),
        cost_estimate=cost,
    )(xT, w_in, b_in, w_hid, b_hid, w_out, b_out)

    return out[:, :N].T                                      # (N, 1)


def init_params(key):
    """PyTorch-style Linear init: U(-1/sqrt(fan_in), +1/sqrt(fan_in)).
    Weights in PyTorch (out, in) layout; biases as (out, 1).  All f32."""
    layers = []
    for (fan_in, fan_out) in LAYER_DIMS:
        key, kw, kb = jax.random.split(key, 3)
        bound = 1.0 / math.sqrt(fan_in)
        w = jax.random.uniform(kw, (fan_out, fan_in), jnp.float32,
                               minval=-bound, maxval=bound)
        b = jax.random.uniform(kb, (fan_out, 1), jnp.float32,
                               minval=-bound, maxval=bound)
        layers.append((w, b))
    return layers


def pack_params(layers):
    """Stack the 8 hidden layers and pre-cast weights to bf16 (single-pass MXU
    inputs); biases stay f32 for the f32 accumulator add."""
    w_in, b_in = layers[0]
    w_out, b_out = layers[-1]
    w_hid = jnp.stack([w for (w, _) in layers[1:-1]])        # (8, 20, 20)
    b_hid = jnp.stack([b for (_, b) in layers[1:-1]])        # (8, 20, 1)
    return (w_in.astype(jnp.bfloat16), b_in,
            w_hid.astype(jnp.bfloat16), b_hid,
            w_out.astype(jnp.bfloat16), b_out)


def reference_forward_f32(x, layers):
    """Pure-JAX f32 reference matching the PyTorch module exactly."""
    h = x
    for li, (w, b) in enumerate(layers):
        h = h @ w.T + b[:, 0]
        if li < N_LAYERS - 1:
            h = h * jax.nn.sigmoid(h)
    return h


def reference_forward_mixed(x, layers):
    """Reference that mimics the kernel's numerics exactly: bf16 matmul inputs,
    f32 accumulation, tanh-form Swish."""
    h = x.T.astype(jnp.float32)
    for li, (w, b) in enumerate(layers):
        h = jnp.dot(w.astype(jnp.bfloat16), h.astype(jnp.bfloat16),
                    preferred_element_type=jnp.float32) + b
        if li < N_LAYERS - 1:
            h = _swish(h)
    return h.T


if __name__ == "__main__":
    key = jax.random.PRNGKey(0)
    k_params, k_x = jax.random.split(key)

    layers = init_params(k_params)
    packed = pack_params(layers)

    # Collocation points in [lb, ub]^3 as in the module's setup.  N is small
    # and deliberately NOT a multiple of tile_n/chunk_n to exercise padding.
    N = 5000
    lb = jnp.array([-7.5, 0.0, -7.5], dtype=jnp.float32)
    ub = jnp.array([15.0, 7.7, 7.5], dtype=jnp.float32)
    u = jax.random.uniform(k_x, (N, INPUT_N), jnp.float32)
    x = lb + u * (ub - lb)

    out = jax.block_until_ready(pinn_v_forward(x, packed))
    assert out.shape == (N, 1)

    # Tight check vs a reference with identical mixed-precision numerics.
    ref_mixed = reference_forward_mixed(x, layers)
    assert jnp.allclose(out, ref_mixed, atol=5e-3, rtol=5e-3), \
        "mismatch vs mixed-precision JAX reference"

    # Loose sanity check vs the full-f32 module semantics (bf16 matmul inputs
    # introduce ~1% relative error over 10 layers).
    ref_f32 = reference_forward_f32(x, layers)
    rel = jnp.linalg.norm(out - ref_f32) / (jnp.linalg.norm(ref_f32) + 1e-12)
    assert rel < 5e-2, f"relative error vs f32 reference too large: {rel}"

    print("KERNEL_OK")
</pallas_src>

<mosaic_0001>
module attributes {stable_mosaic.version = 11 : i64} {
  func.func @_mlp_kernel(%arg0: i32, %arg1: memref<3x2560xf32, #tpu.memory_space<vmem>>, %arg2: memref<20x3xbf16, #tpu.memory_space<vmem>>, %arg3: memref<20x1xf32, #tpu.memory_space<vmem>>, %arg4: memref<8x20x20xbf16, #tpu.memory_space<vmem>>, %arg5: memref<8x20x1xf32, #tpu.memory_space<vmem>>, %arg6: memref<1x20xbf16, #tpu.memory_space<vmem>>, %arg7: memref<1x1xf32, #tpu.memory_space<vmem>>, %arg8: memref<1x2560xf32, #tpu.memory_space<vmem>>) attributes {dimension_semantics = [#tpu.dimension_semantics<parallel>], iteration_bounds = array<i64: 2>, scalar_prefetch = 0 : i64, scratch_operands = 0 : i64, tpu.core_type = #tpu.core_type<tc>, window_params = [{transform_indices = @transform_0, window_bounds = array<i64: 3, 2560>}, {pipeline_mode = #tpu.pipeline_mode<synchronous>, transform_indices = @transform_1, window_bounds = array<i64: 20, 3>}, {pipeline_mode = #tpu.pipeline_mode<synchronous>, transform_indices = @transform_2, window_bounds = array<i64: 20, 1>}, {pipeline_mode = #tpu.pipeline_mode<synchronous>, transform_indices = @transform_3, window_bounds = array<i64: 8, 20, 20>}, {pipeline_mode = #tpu.pipeline_mode<synchronous>, transform_indices = @transform_4, window_bounds = array<i64: 8, 20, 1>}, {pipeline_mode = #tpu.pipeline_mode<synchronous>, transform_indices = @transform_5, window_bounds = array<i64: 1, 20>}, {pipeline_mode = #tpu.pipeline_mode<synchronous>, transform_indices = @transform_6, window_bounds = array<i64: 1, 1>}, {transform_indices = @transform_7, window_bounds = array<i64: 1, 2560>}]} {
    %c0_i32 = arith.constant 0 : i32
    %c5_i32 = arith.constant 5 : i32
    %0 = arith.addi %c0_i32, %c5_i32 : i32
    %c1_i32 = arith.constant 1 : i32
    scf.for %arg9 = %c0_i32 to %0 step %c1_i32  : i32 {
      %c1_i32_1 = arith.constant 1 : i32
      %1 = arith.muli %arg9, %c1_i32_1 : i32
      %c0_i32_2 = arith.constant 0 : i32
      %2 = arith.addi %c0_i32_2, %1 : i32
      %c512_i32 = arith.constant 512 : i32
      %3 = arith.muli %2, %c512_i32 : i32
      %4 = tpu.assume_multiple %3, 512 : i32
      %c0 = arith.constant 0 : index
      %5 = arith.index_cast %4 : i32 to index
      %6 = vector.load %arg1[%c0, %5] : memref<3x2560xf32, #tpu.memory_space<vmem>>, vector<3x512xf32>
      %7 = arith.truncf %6 : vector<3x512xf32> to vector<3x512xbf16>
      %c0_3 = arith.constant 0 : index
      %c0_4 = arith.constant 0 : index
      %8 = vector.load %arg2[%c0_3, %c0_4] : memref<20x3xbf16, #tpu.memory_space<vmem>>, vector<20x3xbf16>
      %cst = arith.constant dense<0.000000e+00> : vector<20x512xf32>
      %9 = tpu.matmul %8, %7, %cst {dimension_numbers = #tpu.dot_dimension_numbers<[1], [0], [0], [1], [0, 0, 1, 1], [], []>} : vector<20x3xbf16>, vector<3x512xbf16>, vector<20x512xf32> -> vector<20x512xf32>
      %c0_5 = arith.constant 0 : index
      %c0_6 = arith.constant 0 : index
      %10 = vector.load %arg3[%c0_5, %c0_6] : memref<20x1xf32, #tpu.memory_space<vmem>>, vector<20x1xf32>
      %11 = vector.broadcast %10 : vector<20x1xf32> to vector<20x512xf32>
      %12 = arith.addf %9, %11 : vector<20x512xf32>
      %cst_7 = arith.constant 5.000000e-01 : f32
      %13 = vector.broadcast %cst_7 : f32 to vector<20x512xf32>
      %14 = arith.mulf %13, %12 : vector<20x512xf32>
      %cst_8 = arith.constant 5.000000e-01 : f32
      %15 = vector.broadcast %cst_8 : f32 to vector<20x512xf32>
      %16 = arith.mulf %15, %12 : vector<20x512xf32>
      %17 = math.tanh %16 : vector<20x512xf32>
      %cst_9 = arith.constant 1.000000e+00 : f32
      %18 = vector.broadcast %cst_9 : f32 to vector<20x512xf32>
      %19 = arith.addf %18, %17 : vector<20x512xf32>
      %20 = arith.mulf %14, %19 : vector<20x512xf32>
      %21 = arith.truncf %20 : vector<20x512xf32> to vector<20x512xbf16>
      %c0_10 = arith.constant 0 : index
      %c0_11 = arith.constant 0 : index
      %c0_12 = arith.constant 0 : index
      %22 = vector.load %arg4[%c0_10, %c0_11, %c0_12] : memref<8x20x20xbf16, #tpu.memory_space<vmem>>, vector<1x20x20xbf16>
      %23 = vector.shape_cast %22 : vector<1x20x20xbf16> to vector<20x20xbf16>
      %cst_13 = arith.constant dense<0.000000e+00> : vector<20x512xf32>
      %24 = tpu.matmul %23, %21, %cst_13 {dimension_numbers = #tpu.dot_dimension_numbers<[1], [0], [0], [1], [0, 0, 1, 1], [], []>} : vector<20x20xbf16>, vector<20x512xbf16>, vector<20x512xf32> -> vector<20x512xf32>
      %c0_14 = arith.constant 0 : index
      %c0_15 = arith.constant 0 : index
      %c0_16 = arith.constant 0 : index
      %25 = vector.load %arg5[%c0_14, %c0_15, %c0_16] : memref<8x20x1xf32, #tpu.memory_space<vmem>>, vector<1x20x1xf32>
      %26 = vector.shape_cast %25 : vector<1x20x1xf32> to vector<20x1xf32>
      %27 = vector.broadcast %26 : vector<20x1xf32> to vector<20x512xf32>
      %28 = arith.addf %24, %27 : vector<20x512xf32>
      %cst_17 = arith.constant 5.000000e-01 : f32
      %29 = vector.broadcast %cst_17 : f32 to vector<20x512xf32>
      %30 = arith.mulf %29, %28 : vector<20x512xf32>
      %cst_18 = arith.constant 5.000000e-01 : f32
      %31 = vector.broadcast %cst_18 : f32 to vector<20x512xf32>
      %32 = arith.mulf %31, %28 : vector<20x512xf32>
      %33 = math.tanh %32 : vector<20x512xf32>
      %cst_19 = arith.constant 1.000000e+00 : f32
      %34 = vector.broadcast %cst_19 : f32 to vector<20x512xf32>
      %35 = arith.addf %34, %33 : vector<20x512xf32>
      %36 = arith.mulf %30, %35 : vector<20x512xf32>
      %37 = arith.truncf %36 : vector<20x512xf32> to vector<20x512xbf16>
      %c1 = arith.constant 1 : index
      %c0_20 = arith.constant 0 : index
      %c0_21 = arith.constant 0 : index
      %38 = vector.load %arg4[%c1, %c0_20, %c0_21] : memref<8x20x20xbf16, #tpu.memory_space<vmem>>, vector<1x20x20xbf16>
      %39 = vector.shape_cast %38 : vector<1x20x20xbf16> to vector<20x20xbf16>
      %cst_22 = arith.constant dense<0.000000e+00> : vector<20x512xf32>
      %40 = tpu.matmul %39, %37, %cst_22 {dimension_numbers = #tpu.dot_dimension_numbers<[1], [0], [0], [1], [0, 0, 1, 1], [], []>} : vector<20x20xbf16>, vector<20x512xbf16>, vector<20x512xf32> -> vector<20x512xf32>
      %c1_23 = arith.constant 1 : index
      %c0_24 = arith.constant 0 : index
      %c0_25 = arith.constant 0 : index
      %41 = vector.load %arg5[%c1_23, %c0_24, %c0_25] : memref<8x20x1xf32, #tpu.memory_space<vmem>>, vector<1x20x1xf32>
      %42 = vector.shape_cast %41 : vector<1x20x1xf32> to vector<20x1xf32>
      %43 = vector.broadcast %42 : vector<20x1xf32> to vector<20x512xf32>
      %44 = arith.addf %40, %43 : vector<20x512xf32>
      %cst_26 = arith.constant 5.000000e-01 : f32
      %45 = vector.broadcast %cst_26 : f32 to vector<20x512xf32>
      %46 = arith.mulf %45, %44 : vector<20x512xf32>
      %cst_27 = arith.constant 5.000000e-01 : f32
      %47 = vector.broadcast %cst_27 : f32 to vector<20x512xf32>
      %48 = arith.mulf %47, %44 : vector<20x512xf32>
      %49 = math.tanh %48 : vector<20x512xf32>
      %cst_28 = arith.constant 1.000000e+00 : f32
      %50 = vector.broadcast %cst_28 : f32 to vector<20x512xf32>
      %51 = arith.addf %50, %49 : vector<20x512xf32>
      %52 = arith.mulf %46, %51 : vector<20x512xf32>
      %53 = arith.truncf %52 : vector<20x512xf32> to vector<20x512xbf16>
      %c2 = arith.constant 2 : index
      %c0_29 = arith.constant 0 : index
      %c0_30 = arith.constant 0 : index
      %54 = vector.load %arg4[%c2, %c0_29, %c0_30] : memref<8x20x20xbf16, #tpu.memory_space<vmem>>, vector<1x20x20xbf16>
      %55 = vector.shape_cast %54 : vector<1x20x20xbf16> to vector<20x20xbf16>
      %cst_31 = arith.constant dense<0.000000e+00> : vector<20x512xf32>
      %56 = tpu.matmul %55, %53, %cst_31 {dimension_numbers = #tpu.dot_dimension_numbers<[1], [0], [0], [1], [0, 0, 1, 1], [], []>} : vector<20x20xbf16>, vector<20x512xbf16>, vector<20x512xf32> -> vector<20x512xf32>
      %c2_32 = arith.constant 2 : index
      %c0_33 = arith.constant 0 : index
      %c0_34 = arith.constant 0 : index
      %57 = vector.load %arg5[%c2_32, %c0_33, %c0_34] : memref<8x20x1xf32, #tpu.memory_space<vmem>>, vector<1x20x1xf32>
      %58 = vector.shape_cast %57 : vector<1x20x1xf32> to vector<20x1xf32>
      %59 = vector.broadcast %58 : vector<20x1xf32> to vector<20x512xf32>
      %60 = arith.addf %56, %59 : vector<20x512xf32>
      %cst_35 = arith.constant 5.000000e-01 : f32
      %61 = vector.broadcast %cst_35 : f32 to vector<20x512xf32>
      %62 = arith.mulf %61, %60 : vector<20x512xf32>
      %cst_36 = arith.constant 5.000000e-01 : f32
      %63 = vector.broadcast %cst_36 : f32 to vector<20x512xf32>
      %64 = arith.mulf %63, %60 : vector<20x512xf32>
      %65 = math.tanh %64 : vector<20x512xf32>
      %cst_37 = arith.constant 1.000000e+00 : f32
      %66 = vector.broadcast %cst_37 : f32 to vector<20x512xf32>
      %67 = arith.addf %66, %65 : vector<20x512xf32>
      %68 = arith.mulf %62, %67 : vector<20x512xf32>
      %69 = arith.truncf %68 : vector<20x512xf32> to vector<20x512xbf16>
      %c3 = arith.constant 3 : index
      %c0_38 = arith.constant 0 : index
      %c0_39 = arith.constant 0 : index
      %70 = vector.load %arg4[%c3, %c0_38, %c0_39] : memref<8x20x20xbf16, #tpu.memory_space<vmem>>, vector<1x20x20xbf16>
      %71 = vector.shape_cast %70 : vector<1x20x20xbf16> to vector<20x20xbf16>
      %cst_40 = arith.constant dense<0.000000e+00> : vector<20x512xf32>
      %72 = tpu.matmul %71, %69, %cst_40 {dimension_numbers = #tpu.dot_dimension_numbers<[1], [0], [0], [1], [0, 0, 1, 1], [], []>} : vector<20x20xbf16>, vector<20x512xbf16>, vector<20x512xf32> -> vector<20x512xf32>
      %c3_41 = arith.constant 3 : index
      %c0_42 = arith.constant 0 : index
      %c0_43 = arith.constant 0 : index
      %73 = vector.load %arg5[%c3_41, %c0_42, %c0_43] : memref<8x20x1xf32, #tpu.memory_space<vmem>>, vector<1x20x1xf32>
      %74 = vector.shape_cast %73 : vector<1x20x1xf32> to vector<20x1xf32>
      %75 = vector.broadcast %74 : vector<20x1xf32> to vector<20x512xf32>
      %76 = arith.addf %72, %75 : vector<20x512xf32>
      %cst_44 = arith.constant 5.000000e-01 : f32
      %77 = vector.broadcast %cst_44 : f32 to vector<20x512xf32>
      %78 = arith.mulf %77, %76 : vector<20x512xf32>
      %cst_45 = arith.constant 5.000000e-01 : f32
      %79 = vector.broadcast %cst_45 : f32 to vector<20x512xf32>
      %80 = arith.mulf %79, %76 : vector<20x512xf32>
      %81 = math.tanh %80 : vector<20x512xf32>
      %cst_46 = arith.constant 1.000000e+00 : f32
      %82 = vector.broadcast %cst_46 : f32 to vector<20x512xf32>
      %83 = arith.addf %82, %81 : vector<20x512xf32>
      %84 = arith.mulf %78, %83 : vector<20x512xf32>
      %85 = arith.truncf %84 : vector<20x512xf32> to vector<20x512xbf16>
      %c4 = arith.constant 4 : index
      %c0_47 = arith.constant 0 : index
      %c0_48 = arith.constant 0 : index
      %86 = vector.load %arg4[%c4, %c0_47, %c0_48] : memref<8x20x20xbf16, #tpu.memory_space<vmem>>, vector<1x20x20xbf16>
      %87 = vector.shape_cast %86 : vector<1x20x20xbf16> to vector<20x20xbf16>
      %cst_49 = arith.constant dense<0.000000e+00> : vector<20x512xf32>
      %88 = tpu.matmul %87, %85, %cst_49 {dimension_numbers = #tpu.dot_dimension_numbers<[1], [0], [0], [1], [0, 0, 1, 1], [], []>} : vector<20x20xbf16>, vector<20x512xbf16>, vector<20x512xf32> -> vector<20x512xf32>
      %c4_50 = arith.constant 4 : index
      %c0_51 = arith.constant 0 : index
      %c0_52 = arith.constant 0 : index
      %89 = vector.load %arg5[%c4_50, %c0_51, %c0_52] : memref<8x20x1xf32, #tpu.memory_space<vmem>>, vector<1x20x1xf32>
      %90 = vector.shape_cast %89 : vector<1x20x1xf32> to vector<20x1xf32>
      %91 = vector.broadcast %90 : vector<20x1xf32> to vector<20x512xf32>
      %92 = arith.addf %88, %91 : vector<20x512xf32>
      %cst_53 = arith.constant 5.000000e-01 : f32
      %93 = vector.broadcast %cst_53 : f32 to vector<20x512xf32>
      %94 = arith.mulf %93, %92 : vector<20x512xf32>
      %cst_54 = arith.constant 5.000000e-01 : f32
      %95 = vector.broadcast %cst_54 : f32 to vector<20x512xf32>
      %96 = arith.mulf %95, %92 : vector<20x512xf32>
      %97 = math.tanh %96 : vector<20x512xf32>
      %cst_55 = arith.constant 1.000000e+00 : f32
      %98 = vector.broadcast %cst_55 : f32 to vector<20x512xf32>
      %99 = arith.addf %98, %97 : vector<20x512xf32>
      %100 = arith.mulf %94, %99 : vector<20x512xf32>
      %101 = arith.truncf %100 : vector<20x512xf32> to vector<20x512xbf16>
      %c5 = arith.constant 5 : index
      %c0_56 = arith.constant 0 : index
      %c0_57 = arith.constant 0 : index
      %102 = vector.load %arg4[%c5, %c0_56, %c0_57] : memref<8x20x20xbf16, #tpu.memory_space<vmem>>, vector<1x20x20xbf16>
      %103 = vector.shape_cast %102 : vector<1x20x20xbf16> to vector<20x20xbf16>
      %cst_58 = arith.constant dense<0.000000e+00> : vector<20x512xf32>
      %104 = tpu.matmul %103, %101, %cst_58 {dimension_numbers = #tpu.dot_dimension_numbers<[1], [0], [0], [1], [0, 0, 1, 1], [], []>} : vector<20x20xbf16>, vector<20x512xbf16>, vector<20x512xf32> -> vector<20x512xf32>
      %c5_59 = arith.constant 5 : index
      %c0_60 = arith.constant 0 : index
      %c0_61 = arith.constant 0 : index
      %105 = vector.load %arg5[%c5_59, %c0_60, %c0_61] : memref<8x20x1xf32, #tpu.memory_space<vmem>>, vector<1x20x1xf32>
      %106 = vector.shape_cast %105 : vector<1x20x1xf32> to vector<20x1xf32>
      %107 = vector.broadcast %106 : vector<20x1xf32> to vector<20x512xf32>
      %108 = arith.addf %104, %107 : vector<20x512xf32>
      %cst_62 = arith.constant 5.000000e-01 : f32
      %109 = vector.broadcast %cst_62 : f32 to vector<20x512xf32>
      %110 = arith.mulf %109, %108 : vector<20x512xf32>
      %cst_63 = arith.constant 5.000000e-01 : f32
      %111 = vector.broadcast %cst_63 : f32 to vector<20x512xf32>
      %112 = arith.mulf %111, %108 : vector<20x512xf32>
      %113 = math.tanh %112 : vector<20x512xf32>
      %cst_64 = arith.constant 1.000000e+00 : f32
      %114 = vector.broadcast %cst_64 : f32 to vector<20x512xf32>
      %115 = arith.addf %114, %113 : vector<20x512xf32>
      %116 = arith.mulf %110, %115 : vector<20x512xf32>
      %117 = arith.truncf %116 : vector<20x512xf32> to vector<20x512xbf16>
      %c6 = arith.constant 6 : index
      %c0_65 = arith.constant 0 : index
      %c0_66 = arith.constant 0 : index
      %118 = vector.load %arg4[%c6, %c0_65, %c0_66] : memref<8x20x20xbf16, #tpu.memory_space<vmem>>, vector<1x20x20xbf16>
      %119 = vector.shape_cast %118 : vector<1x20x20xbf16> to vector<20x20xbf16>
      %cst_67 = arith.constant dense<0.000000e+00> : vector<20x512xf32>
      %120 = tpu.matmul %119, %117, %cst_67 {dimension_numbers = #tpu.dot_dimension_numbers<[1], [0], [0], [1], [0, 0, 1, 1], [], []>} : vector<20x20xbf16>, vector<20x512xbf16>, vector<20x512xf32> -> vector<20x512xf32>
      %c6_68 = arith.constant 6 : index
      %c0_69 = arith.constant 0 : index
      %c0_70 = arith.constant 0 : index
      %121 = vector.load %arg5[%c6_68, %c0_69, %c0_70] : memref<8x20x1xf32, #tpu.memory_space<vmem>>, vector<1x20x1xf32>
      %122 = vector.shape_cast %121 : vector<1x20x1xf32> to vector<20x1xf32>
      %123 = vector.broadcast %122 : vector<20x1xf32> to vector<20x512xf32>
      %124 = arith.addf %120, %123 : vector<20x512xf32>
      %cst_71 = arith.constant 5.000000e-01 : f32
      %125 = vector.broadcast %cst_71 : f32 to vector<20x512xf32>
      %126 = arith.mulf %125, %124 : vector<20x512xf32>
      %cst_72 = arith.constant 5.000000e-01 : f32
      %127 = vector.broadcast %cst_72 : f32 to vector<20x512xf32>
      %128 = arith.mulf %127, %124 : vector<20x512xf32>
      %129 = math.tanh %128 : vector<20x512xf32>
      %cst_73 = arith.constant 1.000000e+00 : f32
      %130 = vector.broadcast %cst_73 : f32 to vector<20x512xf32>
      %131 = arith.addf %130, %129 : vector<20x512xf32>
      %132 = arith.mulf %126, %131 : vector<20x512xf32>
      %133 = arith.truncf %132 : vector<20x512xf32> to vector<20x512xbf16>
      %c7 = arith.constant 7 : index
      %c0_74 = arith.constant 0 : index
      %c0_75 = arith.constant 0 : index
      %134 = vector.load %arg4[%c7, %c0_74, %c0_75] : memref<8x20x20xbf16, #tpu.memory_space<vmem>>, vector<1x20x20xbf16>
      %135 = vector.shape_cast %134 : vector<1x20x20xbf16> to vector<20x20xbf16>
      %cst_76 = arith.constant dense<0.000000e+00> : vector<20x512xf32>
      %136 = tpu.matmul %135, %133, %cst_76 {dimension_numbers = #tpu.dot_dimension_numbers<[1], [0], [0], [1], [0, 0, 1, 1], [], []>} : vector<20x20xbf16>, vector<20x512xbf16>, vector<20x512xf32> -> vector<20x512xf32>
      %c7_77 = arith.constant 7 : index
      %c0_78 = arith.constant 0 : index
      %c0_79 = arith.constant 0 : index
      %137 = vector.load %arg5[%c7_77, %c0_78, %c0_79] : memref<8x20x1xf32, #tpu.memory_space<vmem>>, vector<1x20x1xf32>
      %138 = vector.shape_cast %137 : vector<1x20x1xf32> to vector<20x1xf32>
      %139 = vector.broadcast %138 : vector<20x1xf32> to vector<20x512xf32>
      %140 = arith.addf %136, %139 : vector<20x512xf32>
      %cst_80 = arith.constant 5.000000e-01 : f32
      %141 = vector.broadcast %cst_80 : f32 to vector<20x512xf32>
      %142 = arith.mulf %141, %140 : vector<20x512xf32>
      %cst_81 = arith.constant 5.000000e-01 : f32
      %143 = vector.broadcast %cst_81 : f32 to vector<20x512xf32>
      %144 = arith.mulf %143, %140 : vector<20x512xf32>
      %145 = math.tanh %144 : vector<20x512xf32>
      %cst_82 = arith.constant 1.000000e+00 : f32
      %146 = vector.broadcast %cst_82 : f32 to vector<20x512xf32>
      %147 = arith.addf %146, %145 : vector<20x512xf32>
      %148 = arith.mulf %142, %147 : vector<20x512xf32>
      %149 = arith.truncf %148 : vector<20x512xf32> to vector<20x512xbf16>
      %c0_83 = arith.constant 0 : index
      %c0_84 = arith.constant 0 : index
      %150 = vector.load %arg6[%c0_83, %c0_84] : memref<1x20xbf16, #tpu.memory_space<vmem>>, vector<1x20xbf16>
      %cst_85 = arith.constant dense<0.000000e+00> : vector<1x512xf32>
      %151 = tpu.matmul %150, %149, %cst_85 {dimension_numbers = #tpu.dot_dimension_numbers<[1], [0], [0], [1], [0, 0, 1, 1], [], []>} : vector<1x20xbf16>, vector<20x512xbf16>, vector<1x512xf32> -> vector<1x512xf32>
      %c0_86 = arith.constant 0 : index
      %c0_87 = arith.constant 0 : index
      %152 = vector.load %arg7[%c0_86, %c0_87] : memref<1x1xf32, #tpu.memory_space<vmem>>, vector<1x1xf32>
      %153 = vector.broadcast %152 : vector<1x1xf32> to vector<1x512xf32>
      %154 = arith.addf %151, %153 : vector<1x512xf32>
      %c0_88 = arith.constant 0 : index
      %155 = arith.index_cast %4 : i32 to index
      %156 = vector.load %arg8[%c0_88, %155] : memref<1x2560xf32, #tpu.memory_space<vmem>>, vector<1x512xf32>
      tpu.vector_store %arg8[%c0_88, %155], %154 {strides = array<i32>} : memref<1x2560xf32, #tpu.memory_space<vmem>>, vector<1x512xf32>,
    }
    %c5_i32_0 = arith.constant 5 : i32
    return
  }
  func.func @transform_0(%arg0: i32) -> (i32, i32) {
    %c0_i32 = arith.constant 0 : i32
    %c0_i32_0 = arith.constant 0 : i32
    return %c0_i32, %arg0 : i32, i32
  }
  func.func @transform_1(%arg0: i32) -> (i32, i32) {
    %c0_i32 = arith.constant 0 : i32
    %c0_i32_0 = arith.constant 0 : i32
    %c0_i32_1 = arith.constant 0 : i32
    return %c0_i32, %c0_i32_0 : i32, i32
  }
  func.func @transform_2(%arg0: i32) -> (i32, i32) {
    %c0_i32 = arith.constant 0 : i32
    %c0_i32_0 = arith.constant 0 : i32
    %c0_i32_1 = arith.constant 0 : i32
    return %c0_i32, %c0_i32_0 : i32, i32
  }
  func.func @transform_3(%arg0: i32) -> (i32, i32, i32) {
    %c0_i32 = arith.constant 0 : i32
    %c0_i32_0 = arith.constant 0 : i32
    %c0_i32_1 = arith.constant 0 : i32
    %c0_i32_2 = arith.constant 0 : i32
    return %c0_i32, %c0_i32_0, %c0_i32_1 : i32, i32, i32
  }
  func.func @transform_4(%arg0: i32) -> (i32, i32, i32) {
    %c0_i32 = arith.constant 0 : i32
    %c0_i32_0 = arith.constant 0 : i32
    %c0_i32_1 = arith.constant 0 : i32
    %c0_i32_2 = arith.constant 0 : i32
    return %c0_i32, %c0_i32_0, %c0_i32_1 : i32, i32, i32
  }
  func.func @transform_5(%arg0: i32) -> (i32, i32) {
    %c0_i32 = arith.constant 0 : i32
    %c0_i32_0 = arith.constant 0 : i32
    %c0_i32_1 = arith.constant 0 : i32
    return %c0_i32, %c0_i32_0 : i32, i32
  }
  func.func @transform_6(%arg0: i32) -> (i32, i32) {
    %c0_i32 = arith.constant 0 : i32
    %c0_i32_0 = arith.constant 0 : i32
    %c0_i32_1 = arith.constant 0 : i32
    return %c0_i32, %c0_i32_0 : i32, i32
  }
  func.func @transform_7(%arg0: i32) -> (i32, i32) {
    %c0_i32 = arith.constant 0 : i32
    %c0_i32_0 = arith.constant 0 : i32
    return %c0_i32, %arg0 : i32, i32
  }
}

</mosaic_0001>

<llo_original>
// kernel: tpu_custom_call.1
$region0: #{tpu_custom_call.1}
  #allocation0 [shape = 'u32[]', space=smem, size = 0x4, offset = 0x4, fixed_abs, tag = 'smem constant byte address 0x4 - core index']
  #allocation1 [shape = 'u32[144,128]{1,0:T(1,128)}', space=vmem, size = 0x12000, scoped, tag = 'internal scratch']
  #allocation2 [shape = 'f32[1,1]{1,0:T(1,128)S(1)}', space=vmem, size = 0x200, scoped, tag = 'scoped memory for tpu_custom_call.1']
  %s0 = inlined_call_operand.vmem [shape: f32[3,5120], index: 0, kind: input, shape index: {}]
  %s1 = inlined_call_operand.vmem [shape: bf16[20,3], index: 1, kind: input, shape index: {}]
  %s2 = inlined_call_operand.vmem [shape: f32[20,1], index: 2, kind: input, shape index: {}]
  %s3 = inlined_call_operand.vmem [shape: bf16[8,20,20], index: 3, kind: input, shape index: {}]
  %s4 = inlined_call_operand.vmem [shape: f32[8,20,1], index: 4, kind: input, shape index: {}]
  %s5 = inlined_call_operand.vmem [shape: bf16[1,20], index: 5, kind: input, shape index: {}]
  %s6 = inlined_call_operand.<no memory space> [shape: f32[1,1], index: 6, kind: input, shape index: {}]
  %s7 = inlined_call_operand.hbm [shape: f32[1,5120], index: 7, kind: output, shape index: {}]
  %s8 = sld [smem:[#allocation0]]
  $region68: #{tpu_custom_call.1} parent=0
    _
  %s10 = ssub.s32 1, %s8
  %s11 = scalar_select 0, %s10, %s8
  %v12 = vstv %s6
  %13 = vst [vmem:[#allocation2] sm:$0x1] %v12
  $region1: #{tpu_custom_call.1} parent=0
    #allocation3 [shape = 'u8[20480]{0}', space=vmem, size = 0x5000, scoped, tag = 'output window, operand 0']
    #allocation4 [shape = 's32[2]{0}', space=sflag, size = 0x8, scoped, tag = 'scoped memory for tpu_custom_call.1']
    %14 = vsyncpa [#allocation4], 0
    %s15 = scalar_lea.sflag [#allocation4], 1
    %16 = vsyncpa %s15, 0
    loop: start=0, step=1, limit=4
    $region2: #{tpu_custom_call.1} parent=1 // loop_pre_header
      _
    $region3: #{tpu_custom_call.1} parent=1 // loop_header
      %s18 = sphi 0, %s22
      %p19 = scmp.ge.s32.totalorder %s18, 4
      %s28 = sphi 0, %s30
      %s31 = sphi 0, %s28
      %s32 = sphi 0, %s31
      %s48 = sphi 0, %s32
      %s52 = sphi 0, %s52
      %s54 = sphi 0, %s52
      %s55 = sphi 0, %s54
      %s69 = sphi 0, %s55
      %s73 = sphi 0, %s73
      %s75 = sphi 0, %s73
      %s76 = sphi 0, %s75
      %s90 = sphi 0, %s76
      %s94 = sphi 0, %s94
      %s96 = sphi 0, %s94
      %s97 = sphi 0, %s96
      %s111 = sphi 0, %s97
      %s115 = sphi 0, %s115
      %s117 = sphi 0, %s115
      %s118 = sphi 0, %s117
      %s132 = sphi 0, %s118
      %s136 = sphi 0, %s136
      %s138 = sphi 0, %s136
      %s139 = sphi 0, %s138
      %s153 = sphi 0, %s139
      %s157 = sphi 0, %s157
      %s159 = sphi 0, %s157
      %s160 = sphi 0, %s159
      %s174 = sphi 0, %s160
      %s180 = sphi 0, %s182
      %s183 = sphi 0, %s180
      %s184 = sphi 0, %s183
      %s200 = sphi 0, %s184
    $region4: #{tpu_custom_call.1} parent=1 // loop_header_branch
      %21 = sbr.rel (%p19) target = $region8
    $region5: #{tpu_custom_call.1} parent=1 // loop_body
      %s23 = ssub.s32 %s18, 1
      %s24 = ssub.s32 %s18, 2
      %s25 = sadd.s32 %s18, 1
      %s26 = ssub.s32 %s18, %s25
      %p27 = scmp.eq.s32.totalorder %s26, 0
      %s29 = sadd.s32 %s28, 1
      %s30 = scalar_select %p27, %s28, %s29
      %p33 = pneg %p27
      %p34 = scmp.eq.s32.totalorder %s18, 1
      %p35 = por %p33, %p34
      %p36 = scmp.ne.s32.totalorder %s28, %s31
      %p37 = scmp.eq.s32.totalorder %s18, 0
      %p38 = por %p36, %p37
      %p39 = scmp.ne.s32.totalorder %s28, %s31
      %p40 = scmp.eq.s32.totalorder %s23, 1
      %p41 = por %p39, %p40
      %p42 = scmp.ne.s32.totalorder %s31, %s32
      %p43 = scmp.eq.s32.totalorder %s23, 0
      %p44 = por %p42, %p43
      %p45 = scmp.ne.s32.totalorder %s31, %s32
      %p46 = scmp.eq.s32.totalorder %s24, 1
      %p47 = por %p45, %p46
      %p49 = scmp.ne.s32.totalorder %s32, %s48
      %p50 = scmp.eq.s32.totalorder %s24, 0
      %p51 = por %p49, %p50
      %s53 = sadd.s32 %s52, 1
      %p56 = scmp.eq.s32.totalorder %s18, 1
      %p57 = scmp.ne.s32.totalorder %s52, %s54
      %p58 = scmp.eq.s32.totalorder %s18, 0
      %p59 = por %p57, %p58
      %p60 = scmp.ne.s32.totalorder %s52, %s54
      %p61 = scmp.eq.s32.totalorder %s23, 1
      %p62 = por %p60, %p61
      %p63 = scmp.ne.s32.totalorder %s54, %s55
      %p64 = scmp.eq.s32.totalorder %s23, 0
      %p65 = por %p63, %p64
      %p66 = scmp.ne.s32.totalorder %s54, %s55
      %p67 = scmp.eq.s32.totalorder %s24, 1
      %p68 = por %p66, %p67
      %p70 = scmp.ne.s32.totalorder %s55, %s69
      %p71 = scmp.eq.s32.totalorder %s24, 0
      %p72 = por %p70, %p71
      %s74 = sadd.s32 %s73, 1
      %p77 = scmp.eq.s32.totalorder %s18, 1
      %p78 = scmp.ne.s32.totalorder %s73, %s75
      %p79 = scmp.eq.s32.totalorder %s18, 0
      %p80 = por %p78, %p79
      %p81 = scmp.ne.s32.totalorder %s73, %s75
      %p82 = scmp.eq.s32.totalorder %s23, 1
      %p83 = por %p81, %p82
      %p84 = scmp.ne.s32.totalorder %s75, %s76
      %p85 = scmp.eq.s32.totalorder %s23, 0
      %p86 = por %p84, %p85
      %p87 = scmp.ne.s32.totalorder %s75, %s76
      %p88 = scmp.eq.s32.totalorder %s24, 1
      %p89 = por %p87, %p88
      %p91 = scmp.ne.s32.totalorder %s76, %s90
      %p92 = scmp.eq.s32.totalorder %s24, 0
      %p93 = por %p91, %p92
      %s95 = sadd.s32 %s94, 1
      %p98 = scmp.eq.s32.totalorder %s18, 1
      %p99 = scmp.ne.s32.totalorder %s94, %s96
      %p100 = scmp.eq.s32.totalorder %s18, 0
      %p101 = por %p99, %p100
      %p102 = scmp.ne.s32.totalorder %s94, %s96
      %p103 = scmp.eq.s32.totalorder %s23, 1
      %p104 = por %p102, %p103
      %p105 = scmp.ne.s32.totalorder %s96, %s97
      %p106 = scmp.eq.s32.totalorder %s23, 0
      %p107 = por %p105, %p106
      %p108 = scmp.ne.s32.totalorder %s96, %s97
      %p109 = scmp.eq.s32.totalorder %s24, 1
      %p110 = por %p108, %p109
      %p112 = scmp.ne.s32.totalorder %s97, %s111
      %p113 = scmp.eq.s32.totalorder %s24, 0
      %p114 = por %p112, %p113
      %s116 = sadd.s32 %s115, 1
      %p119 = scmp.eq.s32.totalorder %s18, 1
      %p120 = scmp.ne.s32.totalorder %s115, %s117
      %p121 = scmp.eq.s32.totalorder %s18, 0
      %p122 = por %p120, %p121
      %p123 = scmp.ne.s32.totalorder %s115, %s117
      %p124 = scmp.eq.s32.totalorder %s23, 1
      %p125 = por %p123, %p124
      %p126 = scmp.ne.s32.totalorder %s117, %s118
      %p127 = scmp.eq.s32.totalorder %s23, 0
      %p128 = por %p126, %p127
      %p129 = scmp.ne.s32.totalorder %s117, %s118
      %p130 = scmp.eq.s32.totalorder %s24, 1
      %p131 = por %p129, %p130
      %p133 = scmp.ne.s32.totalorder %s118, %s132
      %p134 = scmp.eq.s32.totalorder %s24, 0
      %p135 = por %p133, %p134
      %s137 = sadd.s32 %s136, 1
      %p140 = scmp.eq.s32.totalorder %s18, 1
      %p141 = scmp.ne.s32.totalorder %s136, %s138
      %p142 = scmp.eq.s32.totalorder %s18, 0
      %p143 = por %p141, %p142
      %p144 = scmp.ne.s32.totalorder %s136, %s138
      %p145 = scmp.eq.s32.totalorder %s23, 1
      %p146 = por %p144, %p145
      %p147 = scmp.ne.s32.totalorder %s138, %s139
      %p148 = scmp.eq.s32.totalorder %s23, 0
      %p149 = por %p147, %p148
      %p150 = scmp.ne.s32.totalorder %s138, %s139
      %p151 = scmp.eq.s32.totalorder %s24, 1
      %p152 = por %p150, %p151
      %p154 = scmp.ne.s32.totalorder %s139, %s153
      %p155 = scmp.eq.s32.totalorder %s24, 0
      %p156 = por %p154, %p155
      %s158 = sadd.s32 %s157, 1
      %p161 = scmp.eq.s32.totalorder %s18, 1
      %p162 = scmp.ne.s32.totalorder %s157, %s159
      %p163 = scmp.eq.s32.totalorder %s18, 0
      %p164 = por %p162, %p163
      %p165 = scmp.ne.s32.totalorder %s157, %s159
      %p166 = scmp.eq.s32.totalorder %s23, 1
      %p167 = por %p165, %p166
      %p168 = scmp.ne.s32.totalorder %s159, %s160
      %p169 = scmp.eq.s32.totalorder %s23, 0
      %p170 = por %p168, %p169
      %p171 = scmp.ne.s32.totalorder %s159, %s160
      %p172 = scmp.eq.s32.totalorder %s24, 1
      %p173 = por %p171, %p172
      %p175 = scmp.ne.s32.totalorder %s160, %s174
      %p176 = scmp.eq.s32.totalorder %s24, 0
      %p177 = por %p175, %p176
      %s178 = ssub.s32 %s18, %s25
      %p179 = scmp.eq.s32.totalorder %s178, 0
      %s181 = sadd.s32 %s180, 1
      %s182 = scalar_select %p179, %s180, %s181
      %p185 = pneg %p179
      %p186 = scmp.eq.s32.totalorder %s18, 1
      %p187 = por %p185, %p186
      %p188 = scmp.ne.s32.totalorder %s180, %s183
      %p189 = scmp.eq.s32.totalorder %s18, 0
      %p190 = por %p188, %p189
      %p191 = scmp.ne.s32.totalorder %s180, %s183
      %p192 = scmp.eq.s32.totalorder %s23, 1
      %p193 = por %p191, %p192
      %p194 = scmp.ne.s32.totalorder %s183, %s184
      %p195 = scmp.eq.s32.totalorder %s23, 0
      %p196 = por %p194, %p195
      %p197 = scmp.ne.s32.totalorder %s183, %s184
      %p198 = scmp.eq.s32.totalorder %s24, 1
      %p199 = por %p197, %p198
      %p201 = scmp.ne.s32.totalorder %s184, %s200
      %p202 = scmp.eq.s32.totalorder %s24, 0
      %p203 = por %p201, %p202
      %p204 = scmp.le.s32.totalorder 1, %s18
      %p205 = scmp.lt.s32.totalorder %s18, 3
      %p206 = pnand %p204, %p205
      %p207 = pneg %p206
      // Predicated region
      $region9: #{tpu_custom_call.1} parent=5 // pred_check
        _
      $region10: #{tpu_custom_call.1} parent=5 // pred_check_branch
        %209 = sbr.rel (%p206) target = $region12
      $region11: #{tpu_custom_call.1} parent=5 // pred_region
        %s210 = ssub.s32 %s18, 1
        // Predicated region
        $region13: #{tpu_custom_call.1} parent=11 // pred_check
          %p211 = pneg %p65
        $region14: #{tpu_custom_call.1} parent=11 // pred_check_branch
          %213 = sbr.rel (%p211) target = $region16
        $region15: #{tpu_custom_call.1} parent=11 // pred_region
          _
        $region16: #{tpu_custom_call.1} parent=11 // pred_fallthru
          _
        // Predicated region
        $region17: #{tpu_custom_call.1} parent=11 // pred_check
          %p214 = pneg %p86
        $region18: #{tpu_custom_call.1} parent=11 // pred_check_branch
          %216 = sbr.rel (%p214) target = $region20
        $region19: #{tpu_custom_call.1} parent=11 // pred_region
          _
        $region20: #{tpu_custom_call.1} parent=11 // pred_fallthru
          _
        // Predicated region
        $region21: #{tpu_custom_call.1} parent=11 // pred_check
          %p217 = pneg %p107
        $region22: #{tpu_custom_call.1} parent=11 // pred_check_branch
          %219 = sbr.rel (%p217) target = $region24
        $region23: #{tpu_custom_call.1} parent=11 // pred_region
          _
        $region24: #{tpu_custom_call.1} parent=11 // pred_fallthru
          _
        // Predicated region
        $region25: #{tpu_custom_call.1} parent=11 // pred_check
          %p220 = pneg %p128
        $region26: #{tpu_custom_call.1} parent=11 // pred_check_branch
          %222 = sbr.rel (%p220) target = $region28
        $region27: #{tpu_custom_call.1} parent=11 // pred_region
          _
        $region28: #{tpu_custom_call.1} parent=11 // pred_fallthru
          _
        // Predicated region
        $region29: #{tpu_custom_call.1} parent=11 // pred_check
          %p223 = pneg %p149
        $region30: #{tpu_custom_call.1} parent=11 // pred_check_branch
          %225 = sbr.rel (%p223) target = $region32
        $region31: #{tpu_custom_call.1} parent=11 // pred_region
          _
        $region32: #{tpu_custom_call.1} parent=11 // pred_fallthru
          _
        // Predicated region
        $region33: #{tpu_custom_call.1} parent=11 // pred_check
          %p226 = pneg %p170
        $region34: #{tpu_custom_call.1} parent=11 // pred_check_branch
          %228 = sbr.rel (%p226) target = $region36
        $region35: #{tpu_custom_call.1} parent=11 // pred_region
          _
        $region36: #{tpu_custom_call.1} parent=11 // pred_fallthru
          _
      $region12: #{tpu_custom_call.1} parent=5 // pred_fallthru
        _
      %p229 = scmp.lt.s32.totalorder %s18, 2
      // Predicated region
      $region37: #{tpu_custom_call.1} parent=5 // pred_check
        %p230 = pneg %p229
      $region38: #{tpu_custom_call.1} parent=5 // pred_check_branch
        %232 = sbr.rel (%p230) target = $region40
      $region39: #{tpu_custom_call.1} parent=5 // pred_region
        // Predicated region
        $region41: #{tpu_custom_call.1} parent=39 // pred_check
          %p233 = pneg %p38
        $region42: #{tpu_custom_call.1} parent=39 // pred_check_branch
          %235 = sbr.rel (%p233) target = $region44
        $region43: #{tpu_custom_call.1} parent=39 // pred_region
          %s236 = smul.u32 20, %s18
          %p237 = scmp.lt.s32.totalorder %s236, 39
          %s238 = scalar_select %p237, %s236, 39
          %s239 = smul.addr %s238, 4
          %s240 = scalar_lea.vmem %s0, %s239
          %s241 = smul.u32 20, %s18
        $region44: #{tpu_custom_call.1} parent=39 // pred_fallthru
          _
      $region40: #{tpu_custom_call.1} parent=5 // pred_fallthru
        _
      %p242 = scmp.le.s32.totalorder 1, %s18
      %p243 = scmp.lt.s32.totalorder %s18, 3
      %p244 = pnand %p242, %p243
      %p245 = pneg %p244
      // Predicated region
      $region45: #{tpu_custom_call.1} parent=5 // pred_check
        _
      $region46: #{tpu_custom_call.1} parent=5 // pred_check_branch
        %247 = sbr.rel (%p244) target = $region48
      $region47: #{tpu_custom_call.1} parent=5 // pred_region
        %s248 = ssub.s32 %s18, 1
        %s249 = smul.u32 20, %s23
        %p250 = scmp.lt.s32.totalorder %s249, 39
        %s251 = scalar_select %p250, %s249, 39
        %s252 = smul.addr %s251, 4
        %s253 = scalar_lea.vmem %s0, %s252
        %p254 = pneg %p44
        %p255 = pneg %p41
        %p256 = pneg %p65
        %p257 = pneg %p62
        %p258 = pneg %p86
        %p259 = pneg %p83
        %p260 = pneg %p107
        %p261 = pneg %p104
        %p262 = pneg %p128
        %p263 = pneg %p125
        %p264 = pneg %p149
        %p265 = pneg %p146
        %p266 = pneg %p170
        %p267 = pneg %p167
        %p268 = pneg %p196
        %p269 = pneg %p193
        %s270 = sand.u32 %s183, 1
        %s271 = scalar_lea.sflag [#allocation4], %s270
        %s272 = sand.u32 %s183, 1
        %s273 = smul.addr %s272, 20
        %s274 = scalar_lea.vmem [#allocation3], %s273
        %s275 = smul.u32 20, %s23
        %p276 = scmp.lt.s32.totalorder %s275, 39
        %s277 = scalar_select %p276, %s275, 39
        %s278 = smul.addr %s277, 4
        %s279 = scalar_lea.vmem %s0, %s278
        %s280 = smul.u32 20, %s23
        %s281 = smul.u32 20, %s23
        loop: start=0, step=1, limit=5
        $region49: #{tpu_custom_call.1} parent=47 // loop_pre_header
          _
        $region50: #{tpu_custom_call.1} parent=47 // loop_header
          %s284 = sphi 0, %s288
          %p285 = scmp.ge.s32.totalorder %s284, 5
        $region51: #{tpu_custom_call.1} parent=47 // loop_header_branch
          %287 = sbr.rel (%p285) target = $region55
        $region52: #{tpu_custom_call.1} parent=47 // loop_body
          %s289 = smul.u32 %s284, 512
          %s290 = sshra.s32 %s289, 7
          %s291 = sand.u32 %s289, 127
          %s292 = smul.addr %s290, 4
          %s293 = scalar_lea.vmem %s279, %s292
          %v294 = vld [vmem:[%s293] sm:$0x77]
          %v295 = vld [vmem:[%s293 + $0x8] sm:$0x77]
          %v298 = vcombine.high %v294, %v294
          %v299 = vcombine.high %v295, %v295
          %v302 = vpack.c.bf16 %v294, %v294
          %v303 = vpack.c.bf16 %v298, %v298
          %v304 = vpack.c.bf16 %v295, %v295
          %v305 = vpack.c.bf16 %v299, %v299
          %v306 = vld [vmem:[%s1] sm:$0xf]
          %v307 = vld [vmem:[%s1 + $0x4] sm:$0xf]
          %v308 = vld [vmem:[%s1 + $0x8] sm:$0x3]
          %v309 = vld [vmem:[%s2] sm:$0xff]
          %v310 = vld [vmem:[%s2 + $0x8] sm:$0xff]
          %v311 = vld [vmem:[%s2 + $0x10] sm:$0xf]
          %313 = vset.pattern.permute.xlu0 0
          %314 = vperm.xlu0 %313, %v309
          %v315 = vpop.permute.xlu0 %314
          %318 = vset.pattern.permute.xlu0 0
          %319 = vperm.xlu0 %318, %v310
          %v320 = vpop.permute.xlu0 %319
          %323 = vset.pattern.permute.xlu0 0
          %324 = vperm.xlu0 %323, %v311
          %v325 = vpop.permute.xlu0 %324
          %v330 = vunpack.c.l.b16 %v306
          %v331 = vunpack.c.l.b16 %v307
          %v332 = vunpack.c.l.b16 %v308
          %v333 = vpack.c.b16 %v331, %v330
          %v334 = vpack.c.b16 %v332, %v332
          %vm335 = vcmask 23552
          %v337 = vsel %vm335, %v333, 0
          %v340 = vsel %vm335, %v334, 0
          %vm342 = vcmask 1040384
          %vm343 = vcmask 1041408
          %v344 = vsel %vm342, 4294967295, 65535
          %v345 = vsel %vm343, %v344, 0
          %v347 = vand.u32 %v302, %v345
          %v350 = vand.u32 %v303, %v345
          %v353 = vand.u32 %v304, %v345
          %v356 = vand.u32 %v305, %v345
          %358 = vmatprep.subr.bf16.mxu0 0
          %359 = vmatpush1.bf16.msra.mxu0 0
          %360 = vmatprep.subr.bf16.mxu0 0
          %361 = vmatpush1.bf16.msra.mxu0 0
          %362 = vmatprep.subr.bf16.mxu0 0
          %363 = vmatpush1.bf16.msra.mxu0 0
          %364 = vmatprep.subr.bf16.mxu0 0
          %365 = vmatpush1.bf16.msra.mxu0 0
          %366 = vmatprep.subr.bf16.mxu0 0
          %367 = vmatpush1.bf16.msra.mxu0 0
          %368 = vmatprep.subr.bf16.mxu0 0
          %369 = vmatpush1.bf16.msra.mxu0 0
          %370 = vmatprep.subr.bf16.mxu0 0
          %371 = vmatpush1.bf16.msra.mxu0 0
          %372 = vmatprep.subr.bf16.mxu0 %v350
          %373 = vmatpush1.bf16.msra.mxu0 %v347
          %374 = vmatprep.subr.bf16.mxu0 0
          %375 = vmatpush2.bf16.msra.mxu0 0
          %376 = vmatprep.subr.bf16.mxu0 0
          %377 = vmatpush2.bf16.msra.mxu0 0
          %378 = vmatprep.subr.bf16.mxu0 0
          %379 = vmatpush2.bf16.msra.mxu0 0
          %380 = vmatprep.subr.bf16.mxu0 0
          %381 = vmatpush2.bf16.msra.mxu0 0
          %382 = vmatprep.subr.bf16.mxu0 0
          %383 = vmatpush2.bf16.msra.mxu0 0
          %384 = vmatprep.subr.bf16.mxu0 0
          %385 = vmatpush2.bf16.msra.mxu0 0
          %386 = vmatprep.subr.bf16.mxu0 0
          %387 = vmatpush2.bf16.msra.mxu0 0
          %388 = vmatprep.subr.bf16.mxu0 0
          %389 = vmatpush2.bf16.msra.mxu0 0
          %390 = vmatprep.mubr.bf16.mxu0 0
          %391 = vmatmul.mubr.bf16.gmra.mxu0 %v337
          %v392 = vpop.f32.mrf.mxu0
          %v393 = vadd.f32 %v315, %v392
          %v394 = vpop.f32.mrf.mxu0
          %v395 = vadd.f32 %v315, %v394
          %v396 = vpop.f32.mrf.mxu0
          %v397 = vadd.f32 %v320, %v396
          %v398 = vpop.f32.mrf.mxu0
          %v399 = vadd.f32 %v320, %v398
          %400 = vmatprep.mubr.bf16.mxu0 0
          %401 = vmatmul.mubr.bf16.gmra.mxu0 %v340
          %v402 = vpop.f32.mrf.mxu0
          %v403 = vadd.f32 %v325, %v402
          %v404 = vpop.f32.mrf.mxu0
          %v405 = vadd.f32 %v325, %v404
          %v406 = vpop.f32.mrf.mxu0
          %v407 = vpop.f32.mrf.mxu0
          %408 = vdwg.mxu0
          %409 = vmatprep.subr.bf16.mxu0 0
          %410 = vmatpush1.bf16.msra.mxu0 0
          %411 = vmatprep.subr.bf16.mxu0 0
          %412 = vmatpush1.bf16.msra.mxu0 0
          %413 = vmatprep.subr.bf16.mxu0 0
          %414 = vmatpush1.bf16.msra.mxu0 0
          %415 = vmatprep.subr.bf16.mxu0 0
          %416 = vmatpush1.bf16.msra.mxu0 0
          %417 = vmatprep.subr.bf16.mxu0 0
          %418 = vmatpush1.bf16.msra.mxu0 0
          %419 = vmatprep.subr.bf16.mxu0 0
          %420 = vmatpush1.bf16.msra.mxu0 0
          %421 = vmatprep.subr.bf16.mxu0 0
          %422 = vmatpush1.bf16.msra.mxu0 0
          %423 = vmatprep.subr.bf16.mxu0 %v356
          %424 = vmatpush1.bf16.msra.mxu0 %v353
          %425 = vmatprep.subr.bf16.mxu0 0
          %426 = vmatpush2.bf16.msra.mxu0 0
          %427 = vmatprep.subr.bf16.mxu0 0
          %428 = vmatpush2.bf16.msra.mxu0 0
          %429 = vmatprep.subr.bf16.mxu0 0
          %430 = vmatpush2.bf16.msra.mxu0 0
          %431 = vmatprep.subr.bf16.mxu0 0
          %432 = vmatpush2.bf16.msra.mxu0 0
          %433 = vmatprep.subr.bf16.mxu0 0
          %434 = vmatpush2.bf16.msra.mxu0 0
          %435 = vmatprep.subr.bf16.mxu0 0
          %436 = vmatpush2.bf16.msra.mxu0 0
          %437 = vmatprep.subr.bf16.mxu0 0
          %438 = vmatpush2.bf16.msra.mxu0 0
          %439 = vmatprep.subr.bf16.mxu0 0
          %440 = vmatpush2.bf16.msra.mxu0 0
          %441 = vmatprep.mubr.bf16.mxu0 0
          %442 = vmatmul.mubr.bf16.gmra.mxu0 %v337
          %v443 = vpop.f32.mrf.mxu0
          %v444 = vadd.f32 %v315, %v443
          %v445 = vpop.f32.mrf.mxu0
          %v446 = vadd.f32 %v315, %v445
          %v447 = vpop.f32.mrf.mxu0
          %v448 = vadd.f32 %v320, %v447
          %v449 = vpop.f32.mrf.mxu0
          %v450 = vadd.f32 %v320, %v449
          %451 = vmatprep.mubr.bf16.mxu0 0
          %452 = vmatmul.mubr.bf16.gmra.mxu0 %v340
          %v453 = vpop.f32.mrf.mxu0
          %v454 = vadd.f32 %v325, %v453
          %v455 = vpop.f32.mrf.mxu0
          %v456 = vadd.f32 %v325, %v455
          %v457 = vpop.f32.mrf.mxu0
          %v458 = vpop.f32.mrf.mxu0
          %459 = vdwg.mxu0
          %v460 = vmul.f32 %v393, 0.5
          %v461 = vmul.f32 %v395, 0.5
          %v462 = vmul.f32 %v444, 0.5
          %v463 = vmul.f32 %v446, 0.5
          %v464 = vmul.f32 %v397, 0.5
          %v465 = vmul.f32 %v399, 0.5
          %v466 = vmul.f32 %v448, 0.5
          %v467 = vmul.f32 %v450, 0.5
          %v468 = vmul.f32 %v403, 0.5
          %v469 = vmul.f32 %v405, 0.5
          %v470 = vmul.f32 %v454, 0.5
          %v471 = vmul.f32 %v456, 0.5
          %v472 = vtanh.pop %v460
          %v473 = vtanh.pop %v461
          %v474 = vtanh.pop %v462
          %v475 = vtanh.pop %v463
          %v476 = vtanh.pop %v464
          %v477 = vtanh.pop %v465
          %v478 = vtanh.pop %v466
          %v479 = vtanh.pop %v467
          %v480 = vtanh.pop %v468
          %v481 = vtanh.pop %v469
          %v482 = vtanh.pop %v470
          %v483 = vtanh.pop %v471
          %v484 = vadd.f32 %v472, 1.0
          %v485 = vadd.f32 %v473, 1.0
          %v486 = vadd.f32 %v474, 1.0
          %v487 = vadd.f32 %v475, 1.0
          %v488 = vadd.f32 %v476, 1.0
          %v489 = vadd.f32 %v477, 1.0
          %v490 = vadd.f32 %v478, 1.0
          %v491 = vadd.f32 %v479, 1.0
          %v492 = vadd.f32 %v480, 1.0
          %v493 = vadd.f32 %v481, 1.0
          %v494 = vadd.f32 %v482, 1.0
          %v495 = vadd.f32 %v483, 1.0
          %v496 = vmul.f32 %v460, %v484
          %v497 = vmul.f32 %v461, %v485
          %v498 = vmul.f32 %v462, %v486
          %v499 = vmul.f32 %v463, %v487
          %v500 = vmul.f32 %v464, %v488
          %v501 = vmul.f32 %v465, %v489
          %v502 = vmul.f32 %v466, %v490
          %v503 = vmul.f32 %v467, %v491
          %v504 = vmul.f32 %v468, %v492
          %v505 = vmul.f32 %v469, %v493
          %v506 = vmul.f32 %v470, %v494
          %v507 = vmul.f32 %v471, %v495
          %v508 = vpack.c.bf16 %v500, %v496
          %v509 = vpack.c.bf16 %v501, %v497
          %v510 = vpack.c.bf16 %v502, %v498
          %v511 = vpack.c.bf16 %v503, %v499
          %v512 = vpack.c.bf16 %v504, %v504
          %v513 = vpack.c.bf16 %v505, %v505
          %v514 = vpack.c.bf16 %v506, %v506
          %v515 = vpack.c.bf16 %v507, %v507
          %v516 = vld [vmem:[%s3] sm:$0xf]
          %v517 = vld [vmem:[%s3 + $0x4] sm:$0xf]
          %v518 = vld [vmem:[%s3 + $0x8] sm:$0x3]
          %v519 = vld [vmem:[%s4] sm:$0xff]
          %v520 = vld [vmem:[%s4 + $0x8] sm:$0xff]
          %v521 = vld [vmem:[%s4 + $0x10] sm:$0xf]
          %523 = vset.pattern.permute.xlu0 0
          %524 = vperm.xlu0 %523, %v519
          %v525 = vpop.permute.xlu0 %524
          %528 = vset.pattern.permute.xlu0 0
          %529 = vperm.xlu0 %528, %v520
          %v530 = vpop.permute.xlu0 %529
          %533 = vset.pattern.permute.xlu0 0
          %534 = vperm.xlu0 %533, %v521
          %v535 = vpop.permute.xlu0 %534
          %v540 = vunpack.c.l.b16 %v516
          %v541 = vunpack.c.l.b16 %v517
          %v542 = vunpack.c.l.b16 %v518
          %v543 = vpack.c.b16 %v541, %v540
          %v544 = vpack.c.b16 %v542, %v542
          %vm545 = vcmask 162816
          %v547 = vsel %vm545, %v543, 0
          %v550 = vsel %vm545, %v544, 0
          %v553 = vsel %vm343, %v512, 0
          %v556 = vsel %vm343, %v513, 0
          %v559 = vsel %vm343, %v514, 0
          %v562 = vsel %vm343, %v515, 0
          %564 = vmatprep.subr.bf16.mxu0 0
          %565 = vmatpush1.bf16.msra.mxu0 0
          %566 = vmatprep.subr.bf16.mxu0 0
          %567 = vmatpush1.bf16.msra.mxu0 0
          %568 = vmatprep.subr.bf16.mxu0 0
          %569 = vmatpush1.bf16.msra.mxu0 0
          %570 = vmatprep.subr.bf16.mxu0 0
          %571 = vmatpush1.bf16.msra.mxu0 0
          %572 = vmatprep.subr.bf16.mxu0 0
          %573 = vmatpush1.bf16.msra.mxu0 0
          %574 = vmatprep.subr.bf16.mxu0 0
          %575 = vmatpush1.bf16.msra.mxu0 0
          %576 = vmatprep.subr.bf16.mxu0 %v556
          %577 = vmatpush1.bf16.msra.mxu0 %v553
          %578 = vmatprep.subr.bf16.mxu0 %v509
          %579 = vmatpush1.bf16.msra.mxu0 %v508
          %580 = vmatprep.subr.bf16.mxu0 0
          %581 = vmatpush2.bf16.msra.mxu0 0
          %582 = vmatprep.subr.bf16.mxu0 0
          %583 = vmatpush2.bf16.msra.mxu0 0
          %584 = vmatprep.subr.bf16.mxu0 0
          %585 = vmatpush2.bf16.msra.mxu0 0
          %586 = vmatprep.subr.bf16.mxu0 0
          %587 = vmatpush2.bf16.msra.mxu0 0
          %588 = vmatprep.subr.bf16.mxu0 0
          %589 = vmatpush2.bf16.msra.mxu0 0
          %590 = vmatprep.subr.bf16.mxu0 0
          %591 = vmatpush2.bf16.msra.mxu0 0
          %592 = vmatprep.subr.bf16.mxu0 0
          %593 = vmatpush2.bf16.msra.mxu0 0
          %594 = vmatprep.subr.bf16.mxu0 0
          %595 = vmatpush2.bf16.msra.mxu0 0
          %596 = vmatprep.mubr.bf16.mxu0 0
          %597 = vmatmul.mubr.bf16.gmra.mxu0 %v547
          %v598 = vpop.f32.mrf.mxu0
          %v599 = vadd.f32 %v525, %v598
          %v600 = vpop.f32.mrf.mxu0
          %v601 = vadd.f32 %v525, %v600
          %v602 = vpop.f32.mrf.mxu0
          %v603 = vadd.f32 %v530, %v602
          %v604 = vpop.f32.mrf.mxu0
          %v605 = vadd.f32 %v530, %v604
          %606 = vmatprep.mubr.bf16.mxu0 0
          %607 = vmatmul.mubr.bf16.gmra.mxu0 %v550
          %v608 = vpop.f32.mrf.mxu0
          %v609 = vadd.f32 %v535, %v608
          %v610 = vpop.f32.mrf.mxu0
          %v611 = vadd.f32 %v535, %v610
          %v612 = vpop.f32.mrf.mxu0
          %v613 = vpop.f32.mrf.mxu0
          %614 = vdwg.mxu0
          %615 = vmatprep.subr.bf16.mxu0 0
          %616 = vmatpush1.bf16.msra.mxu0 0
          %617 = vmatprep.subr.bf16.mxu0 0
          %618 = vmatpush1.bf16.msra.mxu0 0
          %619 = vmatprep.subr.bf16.mxu0 0
          %620 = vmatpush1.bf16.msra.mxu0 0
          %621 = vmatprep.subr.bf16.mxu0 0
          %622 = vmatpush1.bf16.msra.mxu0 0
          %623 = vmatprep.subr.bf16.mxu0 0
          %624 = vmatpush1.bf16.msra.mxu0 0
          %625 = vmatprep.subr.bf16.mxu0 0
          %626 = vmatpush1.bf16.msra.mxu0 0
          %627 = vmatprep.subr.bf16.mxu0 %v562
          %628 = vmatpush1.bf16.msra.mxu0 %v559
          %629 = vmatprep.subr.bf16.mxu0 %v511
          %630 = vmatpush1.bf16.msra.mxu0 %v510
          %631 = vmatprep.subr.bf16.mxu0 0
          %632 = vmatpush2.bf16.msra.mxu0 0
          %633 = vmatprep.subr.bf16.mxu0 0
          %634 = vmatpush2.bf16.msra.mxu0 0
          %635 = vmatprep.subr.bf16.mxu0 0
          %636 = vmatpush2.bf16.msra.mxu0 0
          %637 = vmatprep.subr.bf16.mxu0 0
          %638 = vmatpush2.bf16.msra.mxu0 0
          %639 = vmatprep.subr.bf16.mxu0 0
          %640 = vmatpush2.bf16.msra.mxu0 0
          %641 = vmatprep.subr.bf16.mxu0 0
          %642 = vmatpush2.bf16.msra.mxu0 0
          %643 = vmatprep.subr.bf16.mxu0 0
          %644 = vmatpush2.bf16.msra.mxu0 0
          %645 = vmatprep.subr.bf16.mxu0 0
          %646 = vmatpush2.bf16.msra.mxu0 0
          %647 = vmatprep.mubr.bf16.mxu0 0
          %648 = vmatmul.mubr.bf16.gmra.mxu0 %v547
          %v649 = vpop.f32.mrf.mxu0
          %v650 = vadd.f32 %v525, %v649
          %v651 = vpop.f32.mrf.mxu0
          %v652 = vadd.f32 %v525, %v651
          %v653 = vpop.f32.mrf.mxu0
          %v654 = vadd.f32 %v530, %v653
          %v655 = vpop.f32.mrf.mxu0
          %v656 = vadd.f32 %v530, %v655
          %657 = vmatprep.mubr.bf16.mxu0 0
          %658 = vmatmul.mubr.bf16.gmra.mxu0 %v550
          %v659 = vpop.f32.mrf.mxu0
          %v660 = vadd.f32 %v535, %v659
          %v661 = vpop.f32.mrf.mxu0
          %v662 = vadd.f32 %v535, %v661
          %v663 = vpop.f32.mrf.mxu0
          %v664 = vpop.f32.mrf.mxu0
          %665 = vdwg.mxu0
          %v666 = vmul.f32 %v599, 0.5
          %v667 = vmul.f32 %v601, 0.5
          %v668 = vmul.f32 %v650, 0.5
          %v669 = vmul.f32 %v652, 0.5
          %v670 = vmul.f32 %v603, 0.5
          %v671 = vmul.f32 %v605, 0.5
          %v672 = vmul.f32 %v654, 0.5
          %v673 = vmul.f32 %v656, 0.5
          %v674 = vmul.f32 %v609, 0.5
          %v675 = vmul.f32 %v611, 0.5
          %v676 = vmul.f32 %v660, 0.5
          %v677 = vmul.f32 %v662, 0.5
          %v678 = vtanh.pop %v666
          %v679 = vtanh.pop %v667
          %v680 = vtanh.pop %v668
          %v681 = vtanh.pop %v669
          %v682 = vtanh.pop %v670
          %v683 = vtanh.pop %v671
          %v684 = vtanh.pop %v672
          %v685 = vtanh.pop %v673
          %v686 = vtanh.pop %v674
          %v687 = vtanh.pop %v675
          %v688 = vtanh.pop %v676
          %v689 = vtanh.pop %v677
          %v690 = vadd.f32 %v678, 1.0
          %v691 = vadd.f32 %v679, 1.0
          %v692 = vadd.f32 %v680, 1.0
          %v693 = vadd.f32 %v681, 1.0
          %v694 = vadd.f32 %v682, 1.0
          %v695 = vadd.f32 %v683, 1.0
          %v696 = vadd.f32 %v684, 1.0
          %v697 = vadd.f32 %v685, 1.0
          %v698 = vadd.f32 %v686, 1.0
          %v699 = vadd.f32 %v687, 1.0
          %v700 = vadd.f32 %v688, 1.0
          %v701 = vadd.f32 %v689, 1.0
          %v702 = vmul.f32 %v666, %v690
          %v703 = vmul.f32 %v667, %v691
          %v704 = vmul.f32 %v668, %v692
          %v705 = vmul.f32 %v669, %v693
          %v706 = vmul.f32 %v670, %v694
          %v707 = vmul.f32 %v671, %v695
          %v708 = vmul.f32 %v672, %v696
          %v709 = vmul.f32 %v673, %v697
          %v710 = vmul.f32 %v674, %v698
          %v711 = vmul.f32 %v675, %v699
          %v712 = vmul.f32 %v676, %v700
          %v713 = vmul.f32 %v677, %v701
          %v714 = vpack.c.bf16 %v706, %v702
          %v715 = vpack.c.bf16 %v707, %v703
          %v716 = vpack.c.bf16 %v708, %v704
          %v717 = vpack.c.bf16 %v709, %v705
          %v718 = vpack.c.bf16 %v710, %v710
          %v719 = vpack.c.bf16 %v711, %v711
          %v720 = vpack.c.bf16 %v712, %v712
          %v721 = vpack.c.bf16 %v713, %v713
          %s722 = scalar_lea.vmem %s3, 12
          %v723 = vld [vmem:[%s722] sm:$0xf]
          %v724 = vld [vmem:[%s722 + $0x4] sm:$0xf]
          %v725 = vld [vmem:[%s722 + $0x8] sm:$0x3]
          %s726 = scalar_lea.vmem %s4, 24
          %v727 = vld [vmem:[%s726] sm:$0xff]
          %v728 = vld [vmem:[%s726 + $0x8] sm:$0xff]
          %v729 = vld [vmem:[%s726 + $0x10] sm:$0xf]
          %731 = vset.pattern.permute.xlu0 0
          %732 = vperm.xlu0 %731, %v727
          %v733 = vpop.permute.xlu0 %732
          %736 = vset.pattern.permute.xlu0 0
          %737 = vperm.xlu0 %736, %v728
          %v738 = vpop.permute.xlu0 %737
          %741 = vset.pattern.permute.xlu0 0
          %742 = vperm.xlu0 %741, %v729
          %v743 = vpop.permute.xlu0 %742
          %v748 = vunpack.c.l.b16 %v723
          %v749 = vunpack.c.l.b16 %v724
          %v750 = vunpack.c.l.b16 %v725
          %v751 = vpack.c.b16 %v749, %v748
          %v752 = vpack.c.b16 %v750, %v750
          %v754 = vsel %vm545, %v751, 0
          %v757 = vsel %vm545, %v752, 0
          %v760 = vsel %vm343, %v718, 0
          %v763 = vsel %vm343, %v719, 0
          %v766 = vsel %vm343, %v720, 0
          %v769 = vsel %vm343, %v721, 0
          %771 = vmatprep.subr.bf16.mxu0 0
          %772 = vmatpush1.bf16.msra.mxu0 0
          %773 = vmatprep.subr.bf16.mxu0 0
          %774 = vmatpush1.bf16.msra.mxu0 0
          %775 = vmatprep.subr.bf16.mxu0 0
          %776 = vmatpush1.bf16.msra.mxu0 0
          %777 = vmatprep.subr.bf16.mxu0 0
          %778 = vmatpush1.bf16.msra.mxu0 0
          %779 = vmatprep.subr.bf16.mxu0 0
          %780 = vmatpush1.bf16.msra.mxu0 0
          %781 = vmatprep.subr.bf16.mxu0 0
          %782 = vmatpush1.bf16.msra.mxu0 0
          %783 = vmatprep.subr.bf16.mxu0 %v763
          %784 = vmatpush1.bf16.msra.mxu0 %v760
          %785 = vmatprep.subr.bf16.mxu0 %v715
          %786 = vmatpush1.bf16.msra.mxu0 %v714
          %787 = vmatprep.subr.bf16.mxu0 0
          %788 = vmatpush2.bf16.msra.mxu0 0
          %789 = vmatprep.subr.bf16.mxu0 0
          %790 = vmatpush2.bf16.msra.mxu0 0
          %791 = vmatprep.subr.bf16.mxu0 0
          %792 = vmatpush2.bf16.msra.mxu0 0
          %793 = vmatprep.subr.bf16.mxu0 0
          %794 = vmatpush2.bf16.msra.mxu0 0
          %795 = vmatprep.subr.bf16.mxu0 0
          %796 = vmatpush2.bf16.msra.mxu0 0
          %797 = vmatprep.subr.bf16.mxu0 0
          %798 = vmatpush2.bf16.msra.mxu0 0
          %799 = vmatprep.subr.bf16.mxu0 0
          %800 = vmatpush2.bf16.msra.mxu0 0
          %801 = vmatprep.subr.bf16.mxu0 0
          %802 = vmatpush2.bf16.msra.mxu0 0
          %803 = vmatprep.mubr.bf16.mxu0 0
          %804 = vmatmul.mubr.bf16.gmra.mxu0 %v754
          %v805 = vpop.f32.mrf.mxu0
          %v806 = vadd.f32 %v733, %v805
          %v807 = vpop.f32.mrf.mxu0
          %v808 = vadd.f32 %v733, %v807
          %v809 = vpop.f32.mrf.mxu0
          %v810 = vadd.f32 %v738, %v809
          %v811 = vpop.f32.mrf.mxu0
          %v812 = vadd.f32 %v738, %v811
          %813 = vmatprep.mubr.bf16.mxu0 0
          %814 = vmatmul.mubr.bf16.gmra.mxu0 %v757
          %v815 = vpop.f32.mrf.mxu0
          %v816 = vadd.f32 %v743, %v815
          %v817 = vpop.f32.mrf.mxu0
          %v818 = vadd.f32 %v743, %v817
          %v819 = vpop.f32.mrf.mxu0
          %v820 = vpop.f32.mrf.mxu0
          %821 = vdwg.mxu0
          %822 = vmatprep.subr.bf16.mxu0 0
          %823 = vmatpush1.bf16.msra.mxu0 0
          %824 = vmatprep.subr.bf16.mxu0 0
          %825 = vmatpush1.bf16.msra.mxu0 0
          %826 = vmatprep.subr.bf16.mxu0 0
          %827 = vmatpush1.bf16.msra.mxu0 0
          %828 = vmatprep.subr.bf16.mxu0 0
          %829 = vmatpush1.bf16.msra.mxu0 0
          %830 = vmatprep.subr.bf16.mxu0 0
          %831 = vmatpush1.bf16.msra.mxu0 0
          %832 = vmatprep.subr.bf16.mxu0 0
          %833 = vmatpush1.bf16.msra.mxu0 0
          %834 = vmatprep.subr.bf16.mxu0 %v769
          %835 = vmatpush1.bf16.msra.mxu0 %v766
          %836 = vmatprep.subr.bf16.mxu0 %v717
          %837 = vmatpush1.bf16.msra.mxu0 %v716
          %838 = vmatprep.subr.bf16.mxu0 0
          %839 = vmatpush2.bf16.msra.mxu0 0
          %840 = vmatprep.subr.bf16.mxu0 0
          %841 = vmatpush2.bf16.msra.mxu0 0
          %842 = vmatprep.subr.bf16.mxu0 0
          %843 = vmatpush2.bf16.msra.mxu0 0
          %844 = vmatprep.subr.bf16.mxu0 0
          %845 = vmatpush2.bf16.msra.mxu0 0
          %846 = vmatprep.subr.bf16.mxu0 0
          %847 = vmatpush2.bf16.msra.mxu0 0
          %848 = vmatprep.subr.bf16.mxu0 0
          %849 = vmatpush2.bf16.msra.mxu0 0
          %850 = vmatprep.subr.bf16.mxu0 0
          %851 = vmatpush2.bf16.msra.mxu0 0
          %852 = vmatprep.subr.bf16.mxu0 0
          %853 = vmatpush2.bf16.msra.mxu0 0
          %854 = vmatprep.mubr.bf16.mxu0 0
          %855 = vmatmul.mubr.bf16.gmra.mxu0 %v754
          %v856 = vpop.f32.mrf.mxu0
          %v857 = vadd.f32 %v733, %v856
          %v858 = vpop.f32.mrf.mxu0
          %v859 = vadd.f32 %v733, %v858
          %v860 = vpop.f32.mrf.mxu0
          %v861 = vadd.f32 %v738, %v860
          %v862 = vpop.f32.mrf.mxu0
          %v863 = vadd.f32 %v738, %v862
          %864 = vmatprep.mubr.bf16.mxu0 0
          %865 = vmatmul.mubr.bf16.gmra.mxu0 %v757
          %v866 = vpop.f32.mrf.mxu0
          %v867 = vadd.f32 %v743, %v866
          %v868 = vpop.f32.mrf.mxu0
          %v869 = vadd.f32 %v743, %v868
          %v870 = vpop.f32.mrf.mxu0
          %v871 = vpop.f32.mrf.mxu0
          %872 = vdwg.mxu0
          %v873 = vmul.f32 %v806, 0.5
          %v874 = vmul.f32 %v808, 0.5
          %v875 = vmul.f32 %v857, 0.5
          %v876 = vmul.f32 %v859, 0.5
          %v877 = vmul.f32 %v810, 0.5
          %v878 = vmul.f32 %v812, 0.5
          %v879 = vmul.f32 %v861, 0.5
          %v880 = vmul.f32 %v863, 0.5
          %v881 = vmul.f32 %v816, 0.5
          %v882 = vmul.f32 %v818, 0.5
          %v883 = vmul.f32 %v867, 0.5
          %v884 = vmul.f32 %v869, 0.5
          %v885 = vtanh.pop %v873
          %v886 = vtanh.pop %v874
          %v887 = vtanh.pop %v875
          %v888 = vtanh.pop %v876
          %v889 = vtanh.pop %v877
          %v890 = vtanh.pop %v878
          %v891 = vtanh.pop %v879
          %v892 = vtanh.pop %v880
          %v893 = vtanh.pop %v881
          %v894 = vtanh.pop %v882
          %v895 = vtanh.pop %v883
          %v896 = vtanh.pop %v884
          %v897 = vadd.f32 %v885, 1.0
          %v898 = vadd.f32 %v886, 1.0
          %v899 = vadd.f32 %v887, 1.0
          %v900 = vadd.f32 %v888, 1.0
          %v901 = vadd.f32 %v889, 1.0
          %v902 = vadd.f32 %v890, 1.0
          %v903 = vadd.f32 %v891, 1.0
          %v904 = vadd.f32 %v892, 1.0
          %v905 = vadd.f32 %v893, 1.0
          %v906 = vadd.f32 %v894, 1.0
          %v907 = vadd.f32 %v895, 1.0
          %v908 = vadd.f32 %v896, 1.0
          %v909 = vmul.f32 %v873, %v897
          %v910 = vmul.f32 %v874, %v898
          %v911 = vmul.f32 %v875, %v899
          %v912 = vmul.f32 %v876, %v900
          %v913 = vmul.f32 %v877, %v901
          %v914 = vmul.f32 %v878, %v902
          %v915 = vmul.f32 %v879, %v903
          %v916 = vmul.f32 %v880, %v904
          %v917 = vmul.f32 %v881, %v905
          %v918 = vmul.f32 %v882, %v906
          %v919 = vmul.f32 %v883, %v907
          %v920 = vmul.f32 %v884, %v908
          %v921 = vpack.c.bf16 %v913, %v909
          %v922 = vpack.c.bf16 %v914, %v910
          %v923 = vpack.c.bf16 %v915, %v911
          %v924 = vpack.c.bf16 %v916, %v912
          %v925 = vpack.c.bf16 %v917, %v917
          %v926 = vpack.c.bf16 %v918, %v918
          %v927 = vpack.c.bf16 %v919, %v919
          %v928 = vpack.c.bf16 %v920, %v920
          %s929 = scalar_lea.vmem %s3, 24
          %v930 = vld [vmem:[%s929] sm:$0xf]
          %v931 = vld [vmem:[%s929 + $0x4] sm:$0xf]
          %v932 = vld [vmem:[%s929 + $0x8] sm:$0x3]
          %s933 = scalar_lea.vmem %s4, 48
          %v934 = vld [vmem:[%s933] sm:$0xff]
          %v935 = vld [vmem:[%s933 + $0x8] sm:$0xff]
          %v936 = vld [vmem:[%s933 + $0x10] sm:$0xf]
          %938 = vset.pattern.permute.xlu0 0
          %939 = vperm.xlu0 %938, %v934
          %v940 = vpop.permute.xlu0 %939
          %943 = vset.pattern.permute.xlu0 0
          %944 = vperm.xlu0 %943, %v935
          %v945 = vpop.permute.xlu0 %944
          %948 = vset.pattern.permute.xlu0 0
          %949 = vperm.xlu0 %948, %v936
          %v950 = vpop.permute.xlu0 %949
          %v955 = vunpack.c.l.b16 %v930
          %v956 = vunpack.c.l.b16 %v931
          %v957 = vunpack.c.l.b16 %v932
          %v958 = vpack.c.b16 %v956, %v955
          %v959 = vpack.c.b16 %v957, %v957
          %v961 = vsel %vm545, %v958, 0
          %v964 = vsel %vm545, %v959, 0
          %v967 = vsel %vm343, %v925, 0
          %v970 = vsel %vm343, %v926, 0
          %v973 = vsel %vm343, %v927, 0
          %v976 = vsel %vm343, %v928, 0
          %978 = vmatprep.subr.bf16.mxu0 0
          %979 = vmatpush1.bf16.msra.mxu0 0
          %980 = vmatprep.subr.bf16.mxu0 0
          %981 = vmatpush1.bf16.msra.mxu0 0
          %982 = vmatprep.subr.bf16.mxu0 0
          %983 = vmatpush1.bf16.msra.mxu0 0
          %984 = vmatprep.subr.bf16.mxu0 0
          %985 = vmatpush1.bf16.msra.mxu0 0
          %986 = vmatprep.subr.bf16.mxu0 0
          %987 = vmatpush1.bf16.msra.mxu0 0
          %988 = vmatprep.subr.bf16.mxu0 0
          %989 = vmatpush1.bf16.msra.mxu0 0
          %990 = vmatprep.subr.bf16.mxu0 %v970
          %991 = vmatpush1.bf16.msra.mxu0 %v967
          %992 = vmatprep.subr.bf16.mxu0 %v922
          %993 = vmatpush1.bf16.msra.mxu0 %v921
          %994 = vmatprep.subr.bf16.mxu0 0
          %995 = vmatpush2.bf16.msra.mxu0 0
          %996 = vmatprep.subr.bf16.mxu0 0
          %997 = vmatpush2.bf16.msra.mxu0 0
          %998 = vmatprep.subr.bf16.mxu0 0
          %999 = vmatpush2.bf16.msra.mxu0 0
          %1000 = vmatprep.subr.bf16.mxu0 0
          %1001 = vmatpush2.bf16.msra.mxu0 0
          %1002 = vmatprep.subr.bf16.mxu0 0
          %1003 = vmatpush2.bf16.msra.mxu0 0
          %1004 = vmatprep.subr.bf16.mxu0 0
          %1005 = vmatpush2.bf16.msra.mxu0 0
          %1006 = vmatprep.subr.bf16.mxu0 0
          %1007 = vmatpush2.bf16.msra.mxu0 0
          %1008 = vmatprep.subr.bf16.mxu0 0
          %1009 = vmatpush2.bf16.msra.mxu0 0
          %1010 = vmatprep.mubr.bf16.mxu0 0
          %1011 = vmatmul.mubr.bf16.gmra.mxu0 %v961
          %v1012 = vpop.f32.mrf.mxu0
          %v1013 = vadd.f32 %v940, %v1012
          %v1014 = vpop.f32.mrf.mxu0
          %v1015 = vadd.f32 %v940, %v1014
          %v1016 = vpop.f32.mrf.mxu0
          %v1017 = vadd.f32 %v945, %v1016
          %v1018 = vpop.f32.mrf.mxu0
          %v1019 = vadd.f32 %v945, %v1018
          %1020 = vmatprep.mubr.bf16.mxu0 0
          %1021 = vmatmul.mubr.bf16.gmra.mxu0 %v964
          %v1022 = vpop.f32.mrf.mxu0
          %v1023 = vadd.f32 %v950, %v1022
          %v1024 = vpop.f32.mrf.mxu0
          %v1025 = vadd.f32 %v950, %v1024
          %v1026 = vpop.f32.mrf.mxu0
          %v1027 = vpop.f32.mrf.mxu0
          %1028 = vdwg.mxu0
          %1029 = vmatprep.subr.bf16.mxu0 0
          %1030 = vmatpush1.bf16.msra.mxu0 0
          %1031 = vmatprep.subr.bf16.mxu0 0
          %1032 = vmatpush1.bf16.msra.mxu0 0
          %1033 = vmatprep.subr.bf16.mxu0 0
          %1034 = vmatpush1.bf16.msra.mxu0 0
          %1035 = vmatprep.subr.bf16.mxu0 0
          %1036 = vmatpush1.bf16.msra.mxu0 0
          %1037 = vmatprep.subr.bf16.mxu0 0
          %1038 = vmatpush1.bf16.msra.mxu0 0
          %1039 = vmatprep.subr.bf16.mxu0 0
          %1040 = vmatpush1.bf16.msra.mxu0 0
          %1041 = vmatprep.subr.bf16.mxu0 %v976
          %1042 = vmatpush1.bf16.msra.mxu0 %v973
          %1043 = vmatprep.subr.bf16.mxu0 %v924
          %1044 = vmatpush1.bf16.msra.mxu0 %v923
          %1045 = vmatprep.subr.bf16.mxu0 0
          %1046 = vmatpush2.bf16.msra.mxu0 0
          %1047 = vmatprep.subr.bf16.mxu0 0
          %1048 = vmatpush2.bf16.msra.mxu0 0
          %1049 = vmatprep.subr.bf16.mxu0 0
          %1050 = vmatpush2.bf16.msra.mxu0 0
          %1051 = vmatprep.subr.bf16.mxu0 0
          %1052 = vmatpush2.bf16.msra.mxu0 0
          %1053 = vmatprep.subr.bf16.mxu0 0
          %1054 = vmatpush2.bf16.msra.mxu0 0
          %1055 = vmatprep.subr.bf16.mxu0 0
          %1056 = vmatpush2.bf16.msra.mxu0 0
          %1057 = vmatprep.subr.bf16.mxu0 0
          %1058 = vmatpush2.bf16.msra.mxu0 0
          %1059 = vmatprep.subr.bf16.mxu0 0
          %1060 = vmatpush2.bf16.msra.mxu0 0
          %1061 = vmatprep.mubr.bf16.mxu0 0
          %1062 = vmatmul.mubr.bf16.gmra.mxu0 %v961
          %v1063 = vpop.f32.mrf.mxu0
          %v1064 = vadd.f32 %v940, %v1063
          %v1065 = vpop.f32.mrf.mxu0
          %v1066 = vadd.f32 %v940, %v1065
          %v1067 = vpop.f32.mrf.mxu0
          %v1068 = vadd.f32 %v945, %v1067
          %v1069 = vpop.f32.mrf.mxu0
          %v1070 = vadd.f32 %v945, %v1069
          %1071 = vmatprep.mubr.bf16.mxu0 0
          %1072 = vmatmul.mubr.bf16.gmra.mxu0 %v964
          %v1073 = vpop.f32.mrf.mxu0
          %v1074 = vadd.f32 %v950, %v1073
          %v1075 = vpop.f32.mrf.mxu0
          %v1076 = vadd.f32 %v950, %v1075
          %v1077 = vpop.f32.mrf.mxu0
          %v1078 = vpop.f32.mrf.mxu0
          %1079 = vdwg.mxu0
          %v1080 = vmul.f32 %v1013, 0.5
          %v1081 = vmul.f32 %v1015, 0.5
          %v1082 = vmul.f32 %v1064, 0.5
          %v1083 = vmul.f32 %v1066, 0.5
          %v1084 = vmul.f32 %v1017, 0.5
          %v1085 = vmul.f32 %v1019, 0.5
          %v1086 = vmul.f32 %v1068, 0.5
          %v1087 = vmul.f32 %v1070, 0.5
          %v1088 = vmul.f32 %v1023, 0.5
          %v1089 = vmul.f32 %v1025, 0.5
          %v1090 = vmul.f32 %v1074, 0.5
          %v1091 = vmul.f32 %v1076, 0.5
          %v1092 = vtanh.pop %v1080
          %v1093 = vtanh.pop %v1081
          %v1094 = vtanh.pop %v1082
          %v1095 = vtanh.pop %v1083
          %v1096 = vtanh.pop %v1084
          %v1097 = vtanh.pop %v1085
          %v1098 = vtanh.pop %v1086
          %v1099 = vtanh.pop %v1087
          %v1100 = vtanh.pop %v1088
          %v1101 = vtanh.pop %v1089
          %v1102 = vtanh.pop %v1090
          %v1103 = vtanh.pop %v1091
          %v1104 = vadd.f32 %v1092, 1.0
          %v1105 = vadd.f32 %v1093, 1.0
          %v1106 = vadd.f32 %v1094, 1.0
          %v1107 = vadd.f32 %v1095, 1.0
          %v1108 = vadd.f32 %v1096, 1.0
          %v1109 = vadd.f32 %v1097, 1.0
          %v1110 = vadd.f32 %v1098, 1.0
          %v1111 = vadd.f32 %v1099, 1.0
          %v1112 = vadd.f32 %v1100, 1.0
          %v1113 = vadd.f32 %v1101, 1.0
          %v1114 = vadd.f32 %v1102, 1.0
          %v1115 = vadd.f32 %v1103, 1.0
          %v1116 = vmul.f32 %v1080, %v1104
          %v1117 = vmul.f32 %v1081, %v1105
          %v1118 = vmul.f32 %v1082, %v1106
          %v1119 = vmul.f32 %v1083, %v1107
          %v1120 = vmul.f32 %v1084, %v1108
          %v1121 = vmul.f32 %v1085, %v1109
          %v1122 = vmul.f32 %v1086, %v1110
          %v1123 = vmul.f32 %v1087, %v1111
          %v1124 = vmul.f32 %v1088, %v1112
          %v1125 = vmul.f32 %v1089, %v1113
          %v1126 = vmul.f32 %v1090, %v1114
          %v1127 = vmul.f32 %v1091, %v1115
          %v1128 = vpack.c.bf16 %v1120, %v1116
          %v1129 = vpack.c.bf16 %v1121, %v1117
          %v1130 = vpack.c.bf16 %v1122, %v1118
          %v1131 = vpack.c.bf16 %v1123, %v1119
          %v1132 = vpack.c.bf16 %v1124, %v1124
          %v1133 = vpack.c.bf16 %v1125, %v1125
          %v1134 = vpack.c.bf16 %v1126, %v1126
          %v1135 = vpack.c.bf16 %v1127, %v1127
          %s1136 = scalar_lea.vmem %s3, 36
          %v1137 = vld [vmem:[%s1136] sm:$0xf]
          %v1138 = vld [vmem:[%s1136 + $0x4] sm:$0xf]
          %v1139 = vld [vmem:[%s1136 + $0x8] sm:$0x3]
          %s1140 = scalar_lea.vmem %s4, 72
          %v1141 = vld [vmem:[%s1140] sm:$0xff]
          %v1142 = vld [vmem:[%s1140 + $0x8] sm:$0xff]
          %v1143 = vld [vmem:[%s1140 + $0x10] sm:$0xf]
          %1145 = vset.pattern.permute.xlu0 0
          %1146 = vperm.xlu0 %1145, %v1141
          %v1147 = vpop.permute.xlu0 %1146
          %1150 = vset.pattern.permute.xlu0 0
          %1151 = vperm.xlu0 %1150, %v1142
          %v1152 = vpop.permute.xlu0 %1151
          %1155 = vset.pattern.permute.xlu0 0
          %1156 = vperm.xlu0 %1155, %v1143
          %v1157 = vpop.permute.xlu0 %1156
          %v1162 = vunpack.c.l.b16 %v1137
          %v1163 = vunpack.c.l.b16 %v1138
          %v1164 = vunpack.c.l.b16 %v1139
          %v1165 = vpack.c.b16 %v1163, %v1162
          %v1166 = vpack.c.b16 %v1164, %v1164
          %v1168 = vsel %vm545, %v1165, 0
          %v1171 = vsel %vm545, %v1166, 0
          %v1174 = vsel %vm343, %v1132, 0
          %v1177 = vsel %vm343, %v1133, 0
          %v1180 = vsel %vm343, %v1134, 0
          %v1183 = vsel %vm343, %v1135, 0
          %1185 = vmatprep.subr.bf16.mxu0 0
          %1186 = vmatpush1.bf16.msra.mxu0 0
          %1187 = vmatprep.subr.bf16.mxu0 0
          %1188 = vmatpush1.bf16.msra.mxu0 0
          %1189 = vmatprep.subr.bf16.mxu0 0
          %1190 = vmatpush1.bf16.msra.mxu0 0
          %1191 = vmatprep.subr.bf16.mxu0 0
          %1192 = vmatpush1.bf16.msra.mxu0 0
          %1193 = vmatprep.subr.bf16.mxu0 0
          %1194 = vmatpush1.bf16.msra.mxu0 0
          %1195 = vmatprep.subr.bf16.mxu0 0
          %1196 = vmatpush1.bf16.msra.mxu0 0
          %1197 = vmatprep.subr.bf16.mxu0 %v1177
          %1198 = vmatpush1.bf16.msra.mxu0 %v1174
          %1199 = vmatprep.subr.bf16.mxu0 %v1129
          %1200 = vmatpush1.bf16.msra.mxu0 %v1128
          %1201 = vmatprep.subr.bf16.mxu0 0
          %1202 = vmatpush2.bf16.msra.mxu0 0
          %1203 = vmatprep.subr.bf16.mxu0 0
          %1204 = vmatpush2.bf16.msra.mxu0 0
          %1205 = vmatprep.subr.bf16.mxu0 0
          %1206 = vmatpush2.bf16.msra.mxu0 0
          %1207 = vmatprep.subr.bf16.mxu0 0
          %1208 = vmatpush2.bf16.msra.mxu0 0
          %1209 = vmatprep.subr.bf16.mxu0 0
          %1210 = vmatpush2.bf16.msra.mxu0 0
          %1211 = vmatprep.subr.bf16.mxu0 0
          %1212 = vmatpush2.bf16.msra.mxu0 0
          %1213 = vmatprep.subr.bf16.mxu0 0
          %1214 = vmatpush2.bf16.msra.mxu0 0
          %1215 = vmatprep.subr.bf16.mxu0 0
          %1216 = vmatpush2.bf16.msra.mxu0 0
          %1217 = vmatprep.mubr.bf16.mxu0 0
          %1218 = vmatmul.mubr.bf16.gmra.mxu0 %v1168
          %v1219 = vpop.f32.mrf.mxu0
          %v1220 = vadd.f32 %v1147, %v1219
          %v1221 = vpop.f32.mrf.mxu0
          %v1222 = vadd.f32 %v1147, %v1221
          %v1223 = vpop.f32.mrf.mxu0
          %v1224 = vadd.f32 %v1152, %v1223
          %v1225 = vpop.f32.mrf.mxu0
          %v1226 = vadd.f32 %v1152, %v1225
          %1227 = vmatprep.mubr.bf16.mxu0 0
          %1228 = vmatmul.mubr.bf16.gmra.mxu0 %v1171
          %v1229 = vpop.f32.mrf.mxu0
          %v1230 = vadd.f32 %v1157, %v1229
          %v1231 = vpop.f32.mrf.mxu0
          %v1232 = vadd.f32 %v1157, %v1231
          %v1233 = vpop.f32.mrf.mxu0
          %v1234 = vpop.f32.mrf.mxu0
          %1235 = vdwg.mxu0
          %1236 = vmatprep.subr.bf16.mxu0 0
          %1237 = vmatpush1.bf16.msra.mxu0 0
          %1238 = vmatprep.subr.bf16.mxu0 0
          %1239 = vmatpush1.bf16.msra.mxu0 0
          %1240 = vmatprep.subr.bf16.mxu0 0
          %1241 = vmatpush1.bf16.msra.mxu0 0
          %1242 = vmatprep.subr.bf16.mxu0 0
          %1243 = vmatpush1.bf16.msra.mxu0 0
          %1244 = vmatprep.subr.bf16.mxu0 0
          %1245 = vmatpush1.bf16.msra.mxu0 0
          %1246 = vmatprep.subr.bf16.mxu0 0
          %1247 = vmatpush1.bf16.msra.mxu0 0
          %1248 = vmatprep.subr.bf16.mxu0 %v1183
          %1249 = vmatpush1.bf16.msra.mxu0 %v1180
          %1250 = vmatprep.subr.bf16.mxu0 %v1131
          %1251 = vmatpush1.bf16.msra.mxu0 %v1130
          %1252 = vmatprep.subr.bf16.mxu0 0
          %1253 = vmatpush2.bf16.msra.mxu0 0
          %1254 = vmatprep.subr.bf16.mxu0 0
          %1255 = vmatpush2.bf16.msra.mxu0 0
          %1256 = vmatprep.subr.bf16.mxu0 0
          %1257 = vmatpush2.bf16.msra.mxu0 0
          %1258 = vmatprep.subr.bf16.mxu0 0
          %1259 = vmatpush2.bf16.msra.mxu0 0
          %1260 = vmatprep.subr.bf16.mxu0 0
          %1261 = vmatpush2.bf16.msra.mxu0 0
          %1262 = vmatprep.subr.bf16.mxu0 0
          %1263 = vmatpush2.bf16.msra.mxu0 0
          %1264 = vmatprep.subr.bf16.mxu0 0
          %1265 = vmatpush2.bf16.msra.mxu0 0
          %1266 = vmatprep.subr.bf16.mxu0 0
          %1267 = vmatpush2.bf16.msra.mxu0 0
          %1268 = vmatprep.mubr.bf16.mxu0 0
          %1269 = vmatmul.mubr.bf16.gmra.mxu0 %v1168
          %v1270 = vpop.f32.mrf.mxu0
          %v1271 = vadd.f32 %v1147, %v1270
          %v1272 = vpop.f32.mrf.mxu0
          %v1273 = vadd.f32 %v1147, %v1272
          %v1274 = vpop.f32.mrf.mxu0
          %v1275 = vadd.f32 %v1152, %v1274
          %v1276 = vpop.f32.mrf.mxu0
          %v1277 = vadd.f32 %v1152, %v1276
          %1278 = vmatprep.mubr.bf16.mxu0 0
          %1279 = vmatmul.mubr.bf16.gmra.mxu0 %v1171
          %v1280 = vpop.f32.mrf.mxu0
          %v1281 = vadd.f32 %v1157, %v1280
          %v1282 = vpop.f32.mrf.mxu0
          %v1283 = vadd.f32 %v1157, %v1282
          %v1284 = vpop.f32.mrf.mxu0
          %v1285 = vpop.f32.mrf.mxu0
          %1286 = vdwg.mxu0
          %v1287 = vmul.f32 %v1220, 0.5
          %v1288 = vmul.f32 %v1222, 0.5
          %v1289 = vmul.f32 %v1271, 0.5
          %v1290 = vmul.f32 %v1273, 0.5
          %v1291 = vmul.f32 %v1224, 0.5
          %v1292 = vmul.f32 %v1226, 0.5
          %v1293 = vmul.f32 %v1275, 0.5
          %v1294 = vmul.f32 %v1277, 0.5
          %v1295 = vmul.f32 %v1230, 0.5
          %v1296 = vmul.f32 %v1232, 0.5
          %v1297 = vmul.f32 %v1281, 0.5
          %v1298 = vmul.f32 %v1283, 0.5
          %v1299 = vtanh.pop %v1287
          %v1300 = vtanh.pop %v1288
          %v1301 = vtanh.pop %v1289
          %v1302 = vtanh.pop %v1290
          %v1303 = vtanh.pop %v1291
          %v1304 = vtanh.pop %v1292
          %v1305 = vtanh.pop %v1293
          %v1306 = vtanh.pop %v1294
          %v1307 = vtanh.pop %v1295
          %v1308 = vtanh.pop %v1296
          %v1309 = vtanh.pop %v1297
          %v1310 = vtanh.pop %v1298
          %v1311 = vadd.f32 %v1299, 1.0
          %v1312 = vadd.f32 %v1300, 1.0
          %v1313 = vadd.f32 %v1301, 1.0
          %v1314 = vadd.f32 %v1302, 1.0
          %v1315 = vadd.f32 %v1303, 1.0
          %v1316 = vadd.f32 %v1304, 1.0
          %v1317 = vadd.f32 %v1305, 1.0
          %v1318 = vadd.f32 %v1306, 1.0
          %v1319 = vadd.f32 %v1307, 1.0
          %v1320 = vadd.f32 %v1308, 1.0
          %v1321 = vadd.f32 %v1309, 1.0
          %v1322 = vadd.f32 %v1310, 1.0
          %v1323 = vmul.f32 %v1287, %v1311
          %v1324 = vmul.f32 %v1288, %v1312
          %v1325 = vmul.f32 %v1289, %v1313
          %v1326 = vmul.f32 %v1290, %v1314
          %v1327 = vmul.f32 %v1291, %v1315
          %v1328 = vmul.f32 %v1292, %v1316
          %v1329 = vmul.f32 %v1293, %v1317
          %v1330 = vmul.f32 %v1294, %v1318
          %v1331 = vmul.f32 %v1295, %v1319
          %v1332 = vmul.f32 %v1296, %v1320
          %v1333 = vmul.f32 %v1297, %v1321
          %v1334 = vmul.f32 %v1298, %v1322
          %v1335 = vpack.c.bf16 %v1327, %v1323
          %v1336 = vpack.c.bf16 %v1328, %v1324
          %v1337 = vpack.c.bf16 %v1329, %v1325
          %v1338 = vpack.c.bf16 %v1330, %v1326
          %v1339 = vpack.c.bf16 %v1331, %v1331
          %v1340 = vpack.c.bf16 %v1332, %v1332
          %v1341 = vpack.c.bf16 %v1333, %v1333
          %v1342 = vpack.c.bf16 %v1334, %v1334
          %s1343 = scalar_lea.vmem %s3, 48
          %v1344 = vld [vmem:[%s1343] sm:$0xf]
          %v1345 = vld [vmem:[%s1343 + $0x4] sm:$0xf]
          %v1346 = vld [vmem:[%s1343 + $0x8] sm:$0x3]
          %s1347 = scalar_lea.vmem %s4, 96
          %v1348 = vld [vmem:[%s1347] sm:$0xff]
          %v1349 = vld [vmem:[%s1347 + $0x8] sm:$0xff]
          %v1350 = vld [vmem:[%s1347 + $0x10] sm:$0xf]
          %1352 = vset.pattern.permute.xlu0 0
          %1353 = vperm.xlu0 %1352, %v1348
          %v1354 = vpop.permute.xlu0 %1353
          %1357 = vset.pattern.permute.xlu0 0
          %1358 = vperm.xlu0 %1357, %v1349
          %v1359 = vpop.permute.xlu0 %1358
          %1362 = vset.pattern.permute.xlu0 0
          %1363 = vperm.xlu0 %1362, %v1350
          %v1364 = vpop.permute.xlu0 %1363
          %v1369 = vunpack.c.l.b16 %v1344
          %v1370 = vunpack.c.l.b16 %v1345
          %v1371 = vunpack.c.l.b16 %v1346
          %v1372 = vpack.c.b16 %v1370, %v1369
          %v1373 = vpack.c.b16 %v1371, %v1371
          %v1375 = vsel %vm545, %v1372, 0
          %v1378 = vsel %vm545, %v1373, 0
          %v1381 = vsel %vm343, %v1339, 0
          %v1384 = vsel %vm343, %v1340, 0
          %v1387 = vsel %vm343, %v1341, 0
          %v1390 = vsel %vm343, %v1342, 0
          %1392 = vmatprep.subr.bf16.mxu0 0
          %1393 = vmatpush1.bf16.msra.mxu0 0
          %1394 = vmatprep.subr.bf16.mxu0 0
          %1395 = vmatpush1.bf16.msra.mxu0 0
          %1396 = vmatprep.subr.bf16.mxu0 0
          %1397 = vmatpush1.bf16.msra.mxu0 0
          %1398 = vmatprep.subr.bf16.mxu0 0
          %1399 = vmatpush1.bf16.msra.mxu0 0
          %1400 = vmatprep.subr.bf16.mxu0 0
          %1401 = vmatpush1.bf16.msra.mxu0 0
          %1402 = vmatprep.subr.bf16.mxu0 0
          %1403 = vmatpush1.bf16.msra.mxu0 0
          %1404 = vmatprep.subr.bf16.mxu0 %v1384
          %1405 = vmatpush1.bf16.msra.mxu0 %v1381
          %1406 = vmatprep.subr.bf16.mxu0 %v1336
          %1407 = vmatpush1.bf16.msra.mxu0 %v1335
          %1408 = vmatprep.subr.bf16.mxu0 0
          %1409 = vmatpush2.bf16.msra.mxu0 0
          %1410 = vmatprep.subr.bf16.mxu0 0
          %1411 = vmatpush2.bf16.msra.mxu0 0
          %1412 = vmatprep.subr.bf16.mxu0 0
          %1413 = vmatpush2.bf16.msra.mxu0 0
          %1414 = vmatprep.subr.bf16.mxu0 0
          %1415 = vmatpush2.bf16.msra.mxu0 0
          %1416 = vmatprep.subr.bf16.mxu0 0
          %1417 = vmatpush2.bf16.msra.mxu0 0
          %1418 = vmatprep.subr.bf16.mxu0 0
          %1419 = vmatpush2.bf16.msra.mxu0 0
          %1420 = vmatprep.subr.bf16.mxu0 0
          %1421 = vmatpush2.bf16.msra.mxu0 0
          %1422 = vmatprep.subr.bf16.mxu0 0
          %1423 = vmatpush2.bf16.msra.mxu0 0
          %1424 = vmatprep.mubr.bf16.mxu0 0
          %1425 = vmatmul.mubr.bf16.gmra.mxu0 %v1375
          %v1426 = vpop.f32.mrf.mxu0
          %v1427 = vadd.f32 %v1354, %v1426
          %v1428 = vpop.f32.mrf.mxu0
          %v1429 = vadd.f32 %v1354, %v1428
          %v1430 = vpop.f32.mrf.mxu0
          %v1431 = vadd.f32 %v1359, %v1430
          %v1432 = vpop.f32.mrf.mxu0
          %v1433 = vadd.f32 %v1359, %v1432
          %1434 = vmatprep.mubr.bf16.mxu0 0
          %1435 = vmatmul.mubr.bf16.gmra.mxu0 %v1378
          %v1436 = vpop.f32.mrf.mxu0
          %v1437 = vadd.f32 %v1364, %v1436
          %v1438 = vpop.f32.mrf.mxu0
          %v1439 = vadd.f32 %v1364, %v1438
          %v1440 = vpop.f32.mrf.mxu0
          %v1441 = vpop.f32.mrf.mxu0
          %1442 = vdwg.mxu0
          %1443 = vmatprep.subr.bf16.mxu0 0
          %1444 = vmatpush1.bf16.msra.mxu0 0
          %1445 = vmatprep.subr.bf16.mxu0 0
          %1446 = vmatpush1.bf16.msra.mxu0 0
          %1447 = vmatprep.subr.bf16.mxu0 0
          %1448 = vmatpush1.bf16.msra.mxu0 0
          %1449 = vmatprep.subr.bf16.mxu0 0
          %1450 = vmatpush1.bf16.msra.mxu0 0
          %1451 = vmatprep.subr.bf16.mxu0 0
          %1452 = vmatpush1.bf16.msra.mxu0 0
          %1453 = vmatprep.subr.bf16.mxu0 0
          %1454 = vmatpush1.bf16.msra.mxu0 0
          %1455 = vmatprep.subr.bf16.mxu0 %v1390
          %1456 = vmatpush1.bf16.msra.mxu0 %v1387
          %1457 = vmatprep.subr.bf16.mxu0 %v1338
          %1458 = vmatpush1.bf16.msra.mxu0 %v1337
          %1459 = vmatprep.subr.bf16.mxu0 0
          %1460 = vmatpush2.bf16.msra.mxu0 0
          %1461 = vmatprep.subr.bf16.mxu0 0
          %1462 = vmatpush2.bf16.msra.mxu0 0
          %1463 = vmatprep.subr.bf16.mxu0 0
          %1464 = vmatpush2.bf16.msra.mxu0 0
          %1465 = vmatprep.subr.bf16.mxu0 0
          %1466 = vmatpush2.bf16.msra.mxu0 0
          %1467 = vmatprep.subr.bf16.mxu0 0
          %1468 = vmatpush2.bf16.msra.mxu0 0
          %1469 = vmatprep.subr.bf16.mxu0 0
          %1470 = vmatpush2.bf16.msra.mxu0 0
          %1471 = vmatprep.subr.bf16.mxu0 0
          %1472 = vmatpush2.bf16.msra.mxu0 0
          %1473 = vmatprep.subr.bf16.mxu0 0
          %1474 = vmatpush2.bf16.msra.mxu0 0
          %1475 = vmatprep.mubr.bf16.mxu0 0
          %1476 = vmatmul.mubr.bf16.gmra.mxu0 %v1375
          %v1477 = vpop.f32.mrf.mxu0
          %v1478 = vadd.f32 %v1354, %v1477
          %v1479 = vpop.f32.mrf.mxu0
          %v1480 = vadd.f32 %v1354, %v1479
          %v1481 = vpop.f32.mrf.mxu0
          %v1482 = vadd.f32 %v1359, %v1481
          %v1483 = vpop.f32.mrf.mxu0
          %v1484 = vadd.f32 %v1359, %v1483
          %1485 = vmatprep.mubr.bf16.mxu0 0
          %1486 = vmatmul.mubr.bf16.gmra.mxu0 %v1378
          %v1487 = vpop.f32.mrf.mxu0
          %v1488 = vadd.f32 %v1364, %v1487
          %v1489 = vpop.f32.mrf.mxu0
          %v1490 = vadd.f32 %v1364, %v1489
          %v1491 = vpop.f32.mrf.mxu0
          %v1492 = vpop.f32.mrf.mxu0
          %1493 = vdwg.mxu0
          %v1494 = vmul.f32 %v1427, 0.5
          %v1495 = vmul.f32 %v1429, 0.5
          %v1496 = vmul.f32 %v1478, 0.5
          %v1497 = vmul.f32 %v1480, 0.5
          %v1498 = vmul.f32 %v1431, 0.5
          %v1499 = vmul.f32 %v1433, 0.5
          %v1500 = vmul.f32 %v1482, 0.5
          %v1501 = vmul.f32 %v1484, 0.5
          %v1502 = vmul.f32 %v1437, 0.5
          %v1503 = vmul.f32 %v1439, 0.5
          %v1504 = vmul.f32 %v1488, 0.5
          %v1505 = vmul.f32 %v1490, 0.5
          %v1506 = vtanh.pop %v1494
          %v1507 = vtanh.pop %v1495
          %v1508 = vtanh.pop %v1496
          %v1509 = vtanh.pop %v1497
          %v1510 = vtanh.pop %v1498
          %v1511 = vtanh.pop %v1499
          %v1512 = vtanh.pop %v1500
          %v1513 = vtanh.pop %v1501
          %v1514 = vtanh.pop %v1502
          %v1515 = vtanh.pop %v1503
          %v1516 = vtanh.pop %v1504
          %v1517 = vtanh.pop %v1505
          %v1518 = vadd.f32 %v1506, 1.0
          %v1519 = vadd.f32 %v1507, 1.0
          %v1520 = vadd.f32 %v1508, 1.0
          %v1521 = vadd.f32 %v1509, 1.0
          %v1522 = vadd.f32 %v1510, 1.0
          %v1523 = vadd.f32 %v1511, 1.0
          %v1524 = vadd.f32 %v1512, 1.0
          %v1525 = vadd.f32 %v1513, 1.0
          %v1526 = vadd.f32 %v1514, 1.0
          %v1527 = vadd.f32 %v1515, 1.0
          %v1528 = vadd.f32 %v1516, 1.0
          %v1529 = vadd.f32 %v1517, 1.0
          %v1530 = vmul.f32 %v1494, %v1518
          %v1531 = vmul.f32 %v1495, %v1519
          %v1532 = vmul.f32 %v1496, %v1520
          %v1533 = vmul.f32 %v1497, %v1521
          %v1534 = vmul.f32 %v1498, %v1522
          %v1535 = vmul.f32 %v1499, %v1523
          %v1536 = vmul.f32 %v1500, %v1524
          %v1537 = vmul.f32 %v1501, %v1525
          %v1538 = vmul.f32 %v1502, %v1526
          %v1539 = vmul.f32 %v1503, %v1527
          %v1540 = vmul.f32 %v1504, %v1528
          %v1541 = vmul.f32 %v1505, %v1529
          %v1542 = vpack.c.bf16 %v1534, %v1530
          %v1543 = vpack.c.bf16 %v1535, %v1531
          %v1544 = vpack.c.bf16 %v1536, %v1532
          %v1545 = vpack.c.bf16 %v1537, %v1533
          %v1546 = vpack.c.bf16 %v1538, %v1538
          %v1547 = vpack.c.bf16 %v1539, %v1539
          %v1548 = vpack.c.bf16 %v1540, %v1540
          %v1549 = vpack.c.bf16 %v1541, %v1541
          %s1550 = scalar_lea.vmem %s3, 60
          %v1551 = vld [vmem:[%s1550] sm:$0xf]
          %v1552 = vld [vmem:[%s1550 + $0x4] sm:$0xf]
          %v1553 = vld [vmem:[%s1550 + $0x8] sm:$0x3]
          %s1554 = scalar_lea.vmem %s4, 120
          %v1555 = vld [vmem:[%s1554] sm:$0xff]
          %v1556 = vld [vmem:[%s1554 + $0x8] sm:$0xff]
          %v1557 = vld [vmem:[%s1554 + $0x10] sm:$0xf]
          %1559 = vset.pattern.permute.xlu0 0
          %1560 = vperm.xlu0 %1559, %v1555
          %v1561 = vpop.permute.xlu0 %1560
          %1564 = vset.pattern.permute.xlu0 0
          %1565 = vperm.xlu0 %1564, %v1556
          %v1566 = vpop.permute.xlu0 %1565
          %1569 = vset.pattern.permute.xlu0 0
          %1570 = vperm.xlu0 %1569, %v1557
          %v1571 = vpop.permute.xlu0 %1570
          %v1576 = vunpack.c.l.b16 %v1551
          %v1577 = vunpack.c.l.b16 %v1552
          %v1578 = vunpack.c.l.b16 %v1553
          %v1579 = vpack.c.b16 %v1577, %v1576
          %v1580 = vpack.c.b16 %v1578, %v1578
          %v1582 = vsel %vm545, %v1579, 0
          %v1585 = vsel %vm545, %v1580, 0
          %v1588 = vsel %vm343, %v1546, 0
          %v1591 = vsel %vm343, %v1547, 0
          %v1594 = vsel %vm343, %v1548, 0
          %v1597 = vsel %vm343, %v1549, 0
          %1599 = vmatprep.subr.bf16.mxu0 0
          %1600 = vmatpush1.bf16.msra.mxu0 0
          %1601 = vmatprep.subr.bf16.mxu0 0
          %1602 = vmatpush1.bf16.msra.mxu0 0
          %1603 = vmatprep.subr.bf16.mxu0 0
          %1604 = vmatpush1.bf16.msra.mxu0 0
          %1605 = vmatprep.subr.bf16.mxu0 0
          %1606 = vmatpush1.bf16.msra.mxu0 0
          %1607 = vmatprep.subr.bf16.mxu0 0
          %1608 = vmatpush1.bf16.msra.mxu0 0
          %1609 = vmatprep.subr.bf16.mxu0 0
          %1610 = vmatpush1.bf16.msra.mxu0 0
          %1611 = vmatprep.subr.bf16.mxu0 %v1591
          %1612 = vmatpush1.bf16.msra.mxu0 %v1588
          %1613 = vmatprep.subr.bf16.mxu0 %v1543
          %1614 = vmatpush1.bf16.msra.mxu0 %v1542
          %1615 = vmatprep.subr.bf16.mxu0 0
          %1616 = vmatpush2.bf16.msra.mxu0 0
          %1617 = vmatprep.subr.bf16.mxu0 0
          %1618 = vmatpush2.bf16.msra.mxu0 0
          %1619 = vmatprep.subr.bf16.mxu0 0
          %1620 = vmatpush2.bf16.msra.mxu0 0
          %1621 = vmatprep.subr.bf16.mxu0 0
          %1622 = vmatpush2.bf16.msra.mxu0 0
          %1623 = vmatprep.subr.bf16.mxu0 0
          %1624 = vmatpush2.bf16.msra.mxu0 0
          %1625 = vmatprep.subr.bf16.mxu0 0
          %1626 = vmatpush2.bf16.msra.mxu0 0
          %1627 = vmatprep.subr.bf16.mxu0 0
          %1628 = vmatpush2.bf16.msra.mxu0 0
          %1629 = vmatprep.subr.bf16.mxu0 0
          %1630 = vmatpush2.bf16.msra.mxu0 0
          %1631 = vmatprep.mubr.bf16.mxu0 0
          %1632 = vmatmul.mubr.bf16.gmra.mxu0 %v1582
          %v1633 = vpop.f32.mrf.mxu0
          %v1634 = vadd.f32 %v1561, %v1633
          %v1635 = vpop.f32.mrf.mxu0
          %v1636 = vadd.f32 %v1561, %v1635
          %v1637 = vpop.f32.mrf.mxu0
          %v1638 = vadd.f32 %v1566, %v1637
          %v1639 = vpop.f32.mrf.mxu0
          %v1640 = vadd.f32 %v1566, %v1639
          %1641 = vmatprep.mubr.bf16.mxu0 0
          %1642 = vmatmul.mubr.bf16.gmra.mxu0 %v1585
          %v1643 = vpop.f32.mrf.mxu0
          %v1644 = vadd.f32 %v1571, %v1643
          %v1645 = vpop.f32.mrf.mxu0
          %v1646 = vadd.f32 %v1571, %v1645
          %v1647 = vpop.f32.mrf.mxu0
          %v1648 = vpop.f32.mrf.mxu0
          %1649 = vdwg.mxu0
          %1650 = vmatprep.subr.bf16.mxu0 0
          %1651 = vmatpush1.bf16.msra.mxu0 0
          %1652 = vmatprep.subr.bf16.mxu0 0
          %1653 = vmatpush1.bf16.msra.mxu0 0
          %1654 = vmatprep.subr.bf16.mxu0 0
          %1655 = vmatpush1.bf16.msra.mxu0 0
          %1656 = vmatprep.subr.bf16.mxu0 0
          %1657 = vmatpush1.bf16.msra.mxu0 0
          %1658 = vmatprep.subr.bf16.mxu0 0
          %1659 = vmatpush1.bf16.msra.mxu0 0
          %1660 = vmatprep.subr.bf16.mxu0 0
          %1661 = vmatpush1.bf16.msra.mxu0 0
          %1662 = vmatprep.subr.bf16.mxu0 %v1597
          %1663 = vmatpush1.bf16.msra.mxu0 %v1594
          %1664 = vmatprep.subr.bf16.mxu0 %v1545
          %1665 = vmatpush1.bf16.msra.mxu0 %v1544
          %1666 = vmatprep.subr.bf16.mxu0 0
          %1667 = vmatpush2.bf16.msra.mxu0 0
          %1668 = vmatprep.subr.bf16.mxu0 0
          %1669 = vmatpush2.bf16.msra.mxu0 0
          %1670 = vmatprep.subr.bf16.mxu0 0
          %1671 = vmatpush2.bf16.msra.mxu0 0
          %1672 = vmatprep.subr.bf16.mxu0 0
          %1673 = vmatpush2.bf16.msra.mxu0 0
          %1674 = vmatprep.subr.bf16.mxu0 0
          %1675 = vmatpush2.bf16.msra.mxu0 0
          %1676 = vmatprep.subr.bf16.mxu0 0
          %1677 = vmatpush2.bf16.msra.mxu0 0
          %1678 = vmatprep.subr.bf16.mxu0 0
          %1679 = vmatpush2.bf16.msra.mxu0 0
          %1680 = vmatprep.subr.bf16.mxu0 0
          %1681 = vmatpush2.bf16.msra.mxu0 0
          %1682 = vmatprep.mubr.bf16.mxu0 0
          %1683 = vmatmul.mubr.bf16.gmra.mxu0 %v1582
          %v1684 = vpop.f32.mrf.mxu0
          %v1685 = vadd.f32 %v1561, %v1684
          %v1686 = vpop.f32.mrf.mxu0
          %v1687 = vadd.f32 %v1561, %v1686
          %v1688 = vpop.f32.mrf.mxu0
          %v1689 = vadd.f32 %v1566, %v1688
          %v1690 = vpop.f32.mrf.mxu0
          %v1691 = vadd.f32 %v1566, %v1690
          %1692 = vmatprep.mubr.bf16.mxu0 0
          %1693 = vmatmul.mubr.bf16.gmra.mxu0 %v1585
          %v1694 = vpop.f32.mrf.mxu0
          %v1695 = vadd.f32 %v1571, %v1694
          %v1696 = vpop.f32.mrf.mxu0
          %v1697 = vadd.f32 %v1571, %v1696
          %v1698 = vpop.f32.mrf.mxu0
          %v1699 = vpop.f32.mrf.mxu0
          %1700 = vdwg.mxu0
          %v1701 = vmul.f32 %v1634, 0.5
          %v1702 = vmul.f32 %v1636, 0.5
          %v1703 = vmul.f32 %v1685, 0.5
          %v1704 = vmul.f32 %v1687, 0.5
          %v1705 = vmul.f32 %v1638, 0.5
          %v1706 = vmul.f32 %v1640, 0.5
          %v1707 = vmul.f32 %v1689, 0.5
          %v1708 = vmul.f32 %v1691, 0.5
          %v1709 = vmul.f32 %v1644, 0.5
          %v1710 = vmul.f32 %v1646, 0.5
          %v1711 = vmul.f32 %v1695, 0.5
          %v1712 = vmul.f32 %v1697, 0.5
          %v1713 = vtanh.pop %v1701
          %v1714 = vtanh.pop %v1702
          %v1715 = vtanh.pop %v1703
          %v1716 = vtanh.pop %v1704
          %v1717 = vtanh.pop %v1705
          %v1718 = vtanh.pop %v1706
          %v1719 = vtanh.pop %v1707
          %v1720 = vtanh.pop %v1708
          %v1721 = vtanh.pop %v1709
          %v1722 = vtanh.pop %v1710
          %v1723 = vtanh.pop %v1711
          %v1724 = vtanh.pop %v1712
          %v1725 = vadd.f32 %v1713, 1.0
          %v1726 = vadd.f32 %v1714, 1.0
          %v1727 = vadd.f32 %v1715, 1.0
          %v1728 = vadd.f32 %v1716, 1.0
          %v1729 = vadd.f32 %v1717, 1.0
          %v1730 = vadd.f32 %v1718, 1.0
          %v1731 = vadd.f32 %v1719, 1.0
          %v1732 = vadd.f32 %v1720, 1.0
          %v1733 = vadd.f32 %v1721, 1.0
          %v1734 = vadd.f32 %v1722, 1.0
          %v1735 = vadd.f32 %v1723, 1.0
          %v1736 = vadd.f32 %v1724, 1.0
          %v1737 = vmul.f32 %v1701, %v1725
          %v1738 = vmul.f32 %v1702, %v1726
          %v1739 = vmul.f32 %v1703, %v1727
          %v1740 = vmul.f32 %v1704, %v1728
          %v1741 = vmul.f32 %v1705, %v1729
          %v1742 = vmul.f32 %v1706, %v1730
          %v1743 = vmul.f32 %v1707, %v1731
          %v1744 = vmul.f32 %v1708, %v1732
          %v1745 = vmul.f32 %v1709, %v1733
          %v1746 = vmul.f32 %v1710, %v1734
          %v1747 = vmul.f32 %v1711, %v1735
          %v1748 = vmul.f32 %v1712, %v1736
          %v1749 = vpack.c.bf16 %v1741, %v1737
          %v1750 = vpack.c.bf16 %v1742, %v1738
          %v1751 = vpack.c.bf16 %v1743, %v1739
          %v1752 = vpack.c.bf16 %v1744, %v1740
          %v1753 = vpack.c.bf16 %v1745, %v1745
          %v1754 = vpack.c.bf16 %v1746, %v1746
          %v1755 = vpack.c.bf16 %v1747, %v1747
          %v1756 = vpack.c.bf16 %v1748, %v1748
          %s1757 = scalar_lea.vmem %s3, 72
          %v1758 = vld [vmem:[%s1757] sm:$0xf]
          %v1759 = vld [vmem:[%s1757 + $0x4] sm:$0xf]
          %v1760 = vld [vmem:[%s1757 + $0x8] sm:$0x3]
          %s1761 = scalar_lea.vmem %s4, 144
          %v1762 = vld [vmem:[%s1761] sm:$0xff]
          %v1763 = vld [vmem:[%s1761 + $0x8] sm:$0xff]
          %v1764 = vld [vmem:[%s1761 + $0x10] sm:$0xf]
          %1766 = vset.pattern.permute.xlu0 0
          %1767 = vperm.xlu0 %1766, %v1762
          %v1768 = vpop.permute.xlu0 %1767
          %1771 = vset.pattern.permute.xlu0 0
          %1772 = vperm.xlu0 %1771, %v1763
          %v1773 = vpop.permute.xlu0 %1772
          %1776 = vset.pattern.permute.xlu0 0
          %1777 = vperm.xlu0 %1776, %v1764
          %v1778 = vpop.permute.xlu0 %1777
          %v1783 = vunpack.c.l.b16 %v1758
          %v1784 = vunpack.c.l.b16 %v1759
          %v1785 = vunpack.c.l.b16 %v1760
          %v1786 = vpack.c.b16 %v1784, %v1783
          %v1787 = vpack.c.b16 %v1785, %v1785
          %v1789 = vsel %vm545, %v1786, 0
          %v1792 = vsel %vm545, %v1787, 0
          %v1795 = vsel %vm343, %v1753, 0
          %v1798 = vsel %vm343, %v1754, 0
          %v1801 = vsel %vm343, %v1755, 0
          %v1804 = vsel %vm343, %v1756, 0
          %1806 = vmatprep.subr.bf16.mxu0 0
          %1807 = vmatpush1.bf16.msra.mxu0 0
          %1808 = vmatprep.subr.bf16.mxu0 0
          %1809 = vmatpush1.bf16.msra.mxu0 0
          %1810 = vmatprep.subr.bf16.mxu0 0
          %1811 = vmatpush1.bf16.msra.mxu0 0
          %1812 = vmatprep.subr.bf16.mxu0 0
          %1813 = vmatpush1.bf16.msra.mxu0 0
          %1814 = vmatprep.subr.bf16.mxu0 0
          %1815 = vmatpush1.bf16.msra.mxu0 0
          %1816 = vmatprep.subr.bf16.mxu0 0
          %1817 = vmatpush1.bf16.msra.mxu0 0
          %1818 = vmatprep.subr.bf16.mxu0 %v1798
          %1819 = vmatpush1.bf16.msra.mxu0 %v1795
          %1820 = vmatprep.subr.bf16.mxu0 %v1750
          %1821 = vmatpush1.bf16.msra.mxu0 %v1749
          %1822 = vmatprep.subr.bf16.mxu0 0
          %1823 = vmatpush2.bf16.msra.mxu0 0
          %1824 = vmatprep.subr.bf16.mxu0 0
          %1825 = vmatpush2.bf16.msra.mxu0 0
          %1826 = vmatprep.subr.bf16.mxu0 0
          %1827 = vmatpush2.bf16.msra.mxu0 0
          %1828 = vmatprep.subr.bf16.mxu0 0
          %1829 = vmatpush2.bf16.msra.mxu0 0
          %1830 = vmatprep.subr.bf16.mxu0 0
          %1831 = vmatpush2.bf16.msra.mxu0 0
          %1832 = vmatprep.subr.bf16.mxu0 0
          %1833 = vmatpush2.bf16.msra.mxu0 0
          %1834 = vmatprep.subr.bf16.mxu0 0
          %1835 = vmatpush2.bf16.msra.mxu0 0
          %1836 = vmatprep.subr.bf16.mxu0 0
          %1837 = vmatpush2.bf16.msra.mxu0 0
          %1838 = vmatprep.mubr.bf16.mxu0 0
          %1839 = vmatmul.mubr.bf16.gmra.mxu0 %v1789
          %v1840 = vpop.f32.mrf.mxu0
          %v1841 = vadd.f32 %v1768, %v1840
          %v1842 = vpop.f32.mrf.mxu0
          %v1843 = vadd.f32 %v1768, %v1842
          %v1844 = vpop.f32.mrf.mxu0
          %v1845 = vadd.f32 %v1773, %v1844
          %v1846 = vpop.f32.mrf.mxu0
          %v1847 = vadd.f32 %v1773, %v1846
          %1848 = vmatprep.mubr.bf16.mxu0 0
          %1849 = vmatmul.mubr.bf16.gmra.mxu0 %v1792
          %v1850 = vpop.f32.mrf.mxu0
          %v1851 = vadd.f32 %v1778, %v1850
          %v1852 = vpop.f32.mrf.mxu0
          %v1853 = vadd.f32 %v1778, %v1852
          %v1854 = vpop.f32.mrf.mxu0
          %v1855 = vpop.f32.mrf.mxu0
          %1856 = vdwg.mxu0
          %1857 = vmatprep.subr.bf16.mxu0 0
          %1858 = vmatpush1.bf16.msra.mxu0 0
          %1859 = vmatprep.subr.bf16.mxu0 0
          %1860 = vmatpush1.bf16.msra.mxu0 0
          %1861 = vmatprep.subr.bf16.mxu0 0
          %1862 = vmatpush1.bf16.msra.mxu0 0
          %1863 = vmatprep.subr.bf16.mxu0 0
          %1864 = vmatpush1.bf16.msra.mxu0 0
          %1865 = vmatprep.subr.bf16.mxu0 0
          %1866 = vmatpush1.bf16.msra.mxu0 0
          %1867 = vmatprep.subr.bf16.mxu0 0
          %1868 = vmatpush1.bf16.msra.mxu0 0
          %1869 = vmatprep.subr.bf16.mxu0 %v1804
          %1870 = vmatpush1.bf16.msra.mxu0 %v1801
          %1871 = vmatprep.subr.bf16.mxu0 %v1752
          %1872 = vmatpush1.bf16.msra.mxu0 %v1751
          %1873 = vmatprep.subr.bf16.mxu0 0
          %1874 = vmatpush2.bf16.msra.mxu0 0
          %1875 = vmatprep.subr.bf16.mxu0 0
          %1876 = vmatpush2.bf16.msra.mxu0 0
          %1877 = vmatprep.subr.bf16.mxu0 0
          %1878 = vmatpush2.bf16.msra.mxu0 0
          %1879 = vmatprep.subr.bf16.mxu0 0
          %1880 = vmatpush2.bf16.msra.mxu0 0
          %1881 = vmatprep.subr.bf16.mxu0 0
          %1882 = vmatpush2.bf16.msra.mxu0 0
          %1883 = vmatprep.subr.bf16.mxu0 0
          %1884 = vmatpush2.bf16.msra.mxu0 0
          %1885 = vmatprep.subr.bf16.mxu0 0
          %1886 = vmatpush2.bf16.msra.mxu0 0
          %1887 = vmatprep.subr.bf16.mxu0 0
          %1888 = vmatpush2.bf16.msra.mxu0 0
          %1889 = vmatprep.mubr.bf16.mxu0 0
          %1890 = vmatmul.mubr.bf16.gmra.mxu0 %v1789
          %v1891 = vpop.f32.mrf.mxu0
          %v1892 = vadd.f32 %v1768, %v1891
          %v1893 = vpop.f32.mrf.mxu0
          %v1894 = vadd.f32 %v1768, %v1893
          %v1895 = vpop.f32.mrf.mxu0
          %v1896 = vadd.f32 %v1773, %v1895
          %v1897 = vpop.f32.mrf.mxu0
          %v1898 = vadd.f32 %v1773, %v1897
          %1899 = vmatprep.mubr.bf16.mxu0 0
          %1900 = vmatmul.mubr.bf16.gmra.mxu0 %v1792
          %v1901 = vpop.f32.mrf.mxu0
          %v1902 = vadd.f32 %v1778, %v1901
          %v1903 = vpop.f32.mrf.mxu0
          %v1904 = vadd.f32 %v1778, %v1903
          %v1905 = vpop.f32.mrf.mxu0
          %v1906 = vpop.f32.mrf.mxu0
          %1907 = vdwg.mxu0
          %v1908 = vmul.f32 %v1841, 0.5
          %v1909 = vmul.f32 %v1843, 0.5
          %v1910 = vmul.f32 %v1892, 0.5
          %v1911 = vmul.f32 %v1894, 0.5
          %v1912 = vmul.f32 %v1845, 0.5
          %v1913 = vmul.f32 %v1847, 0.5
          %v1914 = vmul.f32 %v1896, 0.5
          %v1915 = vmul.f32 %v1898, 0.5
          %v1916 = vmul.f32 %v1851, 0.5
          %v1917 = vmul.f32 %v1853, 0.5
          %v1918 = vmul.f32 %v1902, 0.5
          %v1919 = vmul.f32 %v1904, 0.5
          %v1920 = vtanh.pop %v1908
          %v1921 = vtanh.pop %v1909
          %v1922 = vtanh.pop %v1910
          %v1923 = vtanh.pop %v1911
          %v1924 = vtanh.pop %v1912
          %v1925 = vtanh.pop %v1913
          %v1926 = vtanh.pop %v1914
          %v1927 = vtanh.pop %v1915
          %v1928 = vtanh.pop %v1916
          %v1929 = vtanh.pop %v1917
          %v1930 = vtanh.pop %v1918
          %v1931 = vtanh.pop %v1919
          %v1932 = vadd.f32 %v1920, 1.0
          %v1933 = vadd.f32 %v1921, 1.0
          %v1934 = vadd.f32 %v1922, 1.0
          %v1935 = vadd.f32 %v1923, 1.0
          %v1936 = vadd.f32 %v1924, 1.0
          %v1937 = vadd.f32 %v1925, 1.0
          %v1938 = vadd.f32 %v1926, 1.0
          %v1939 = vadd.f32 %v1927, 1.0
          %v1940 = vadd.f32 %v1928, 1.0
          %v1941 = vadd.f32 %v1929, 1.0
          %v1942 = vadd.f32 %v1930, 1.0
          %v1943 = vadd.f32 %v1931, 1.0
          %v1944 = vmul.f32 %v1908, %v1932
          %v1945 = vmul.f32 %v1909, %v1933
          %v1946 = vmul.f32 %v1910, %v1934
          %v1947 = vmul.f32 %v1911, %v1935
          %v1948 = vmul.f32 %v1912, %v1936
          %v1949 = vmul.f32 %v1913, %v1937
          %v1950 = vmul.f32 %v1914, %v1938
          %v1951 = vmul.f32 %v1915, %v1939
          %v1952 = vmul.f32 %v1916, %v1940
          %v1953 = vmul.f32 %v1917, %v1941
          %v1954 = vmul.f32 %v1918, %v1942
          %v1955 = vmul.f32 %v1919, %v1943
          %v1956 = vpack.c.bf16 %v1948, %v1944
          %v1957 = vpack.c.bf16 %v1949, %v1945
          %v1958 = vpack.c.bf16 %v1950, %v1946
          %v1959 = vpack.c.bf16 %v1951, %v1947
          %v1960 = vpack.c.bf16 %v1952, %v1952
          %v1961 = vpack.c.bf16 %v1953, %v1953
          %v1962 = vpack.c.bf16 %v1954, %v1954
          %v1963 = vpack.c.bf16 %v1955, %v1955
          %s1964 = scalar_lea.vmem %s3, 84
          %v1965 = vld [vmem:[%s1964] sm:$0xf]
          %v1966 = vld [vmem:[%s1964 + $0x4] sm:$0xf]
          %v1967 = vld [vmem:[%s1964 + $0x8] sm:$0x3]
          %s1968 = scalar_lea.vmem %s4, 168
          %v1969 = vld [vmem:[%s1968] sm:$0xff]
          %v1970 = vld [vmem:[%s1968 + $0x8] sm:$0xff]
          %v1971 = vld [vmem:[%s1968 + $0x10] sm:$0xf]
          %1973 = vset.pattern.permute.xlu0 0
          %1974 = vperm.xlu0 %1973, %v1969
          %v1975 = vpop.permute.xlu0 %1974
          %1978 = vset.pattern.permute.xlu0 0
          %1979 = vperm.xlu0 %1978, %v1970
          %v1980 = vpop.permute.xlu0 %1979
          %1983 = vset.pattern.permute.xlu0 0
          %1984 = vperm.xlu0 %1983, %v1971
          %v1985 = vpop.permute.xlu0 %1984
          %v1990 = vunpack.c.l.b16 %v1965
          %v1991 = vunpack.c.l.b16 %v1966
          %v1992 = vunpack.c.l.b16 %v1967
          %v1993 = vpack.c.b16 %v1991, %v1990
          %v1994 = vpack.c.b16 %v1992, %v1992
          %v1996 = vsel %vm545, %v1993, 0
          %v1999 = vsel %vm545, %v1994, 0
          %v2002 = vsel %vm343, %v1960, 0
          %v2005 = vsel %vm343, %v1961, 0
          %v2008 = vsel %vm343, %v1962, 0
          %v2011 = vsel %vm343, %v1963, 0
          %2013 = vmatprep.subr.bf16.mxu0 0
          %2014 = vmatpush1.bf16.msra.mxu0 0
          %2015 = vmatprep.subr.bf16.mxu0 0
          %2016 = vmatpush1.bf16.msra.mxu0 0
          %2017 = vmatprep.subr.bf16.mxu0 0
          %2018 = vmatpush1.bf16.msra.mxu0 0
          %2019 = vmatprep.subr.bf16.mxu0 0
          %2020 = vmatpush1.bf16.msra.mxu0 0
          %2021 = vmatprep.subr.bf16.mxu0 0
          %2022 = vmatpush1.bf16.msra.mxu0 0
          %2023 = vmatprep.subr.bf16.mxu0 0
          %2024 = vmatpush1.bf16.msra.mxu0 0
          %2025 = vmatprep.subr.bf16.mxu0 %v2005
          %2026 = vmatpush1.bf16.msra.mxu0 %v2002
          %2027 = vmatprep.subr.bf16.mxu0 %v1957
          %2028 = vmatpush1.bf16.msra.mxu0 %v1956
          %2029 = vmatprep.subr.bf16.mxu0 0
          %2030 = vmatpush2.bf16.msra.mxu0 0
          %2031 = vmatprep.subr.bf16.mxu0 0
          %2032 = vmatpush2.bf16.msra.mxu0 0
          %2033 = vmatprep.subr.bf16.mxu0 0
          %2034 = vmatpush2.bf16.msra.mxu0 0
          %2035 = vmatprep.subr.bf16.mxu0 0
          %2036 = vmatpush2.bf16.msra.mxu0 0
          %2037 = vmatprep.subr.bf16.mxu0 0
          %2038 = vmatpush2.bf16.msra.mxu0 0
          %2039 = vmatprep.subr.bf16.mxu0 0
          %2040 = vmatpush2.bf16.msra.mxu0 0
          %2041 = vmatprep.subr.bf16.mxu0 0
          %2042 = vmatpush2.bf16.msra.mxu0 0
          %2043 = vmatprep.subr.bf16.mxu0 0
          %2044 = vmatpush2.bf16.msra.mxu0 0
          %2045 = vmatprep.mubr.bf16.mxu0 0
          %2046 = vmatmul.mubr.bf16.gmra.mxu0 %v1996
          %v2047 = vpop.f32.mrf.mxu0
          %v2048 = vadd.f32 %v1975, %v2047
          %v2049 = vpop.f32.mrf.mxu0
          %v2050 = vadd.f32 %v1975, %v2049
          %v2051 = vpop.f32.mrf.mxu0
          %v2052 = vadd.f32 %v1980, %v2051
          %v2053 = vpop.f32.mrf.mxu0
          %v2054 = vadd.f32 %v1980, %v2053
          %2055 = vmatprep.mubr.bf16.mxu0 0
          %2056 = vmatmul.mubr.bf16.gmra.mxu0 %v1999
          %v2057 = vpop.f32.mrf.mxu0
          %v2058 = vadd.f32 %v1985, %v2057
          %v2059 = vpop.f32.mrf.mxu0
          %v2060 = vadd.f32 %v1985, %v2059
          %v2061 = vpop.f32.mrf.mxu0
          %v2062 = vpop.f32.mrf.mxu0
          %2063 = vdwg.mxu0
          %2064 = vmatprep.subr.bf16.mxu0 0
          %2065 = vmatpush1.bf16.msra.mxu0 0
          %2066 = vmatprep.subr.bf16.mxu0 0
          %2067 = vmatpush1.bf16.msra.mxu0 0
          %2068 = vmatprep.subr.bf16.mxu0 0
          %2069 = vmatpush1.bf16.msra.mxu0 0
          %2070 = vmatprep.subr.bf16.mxu0 0
          %2071 = vmatpush1.bf16.msra.mxu0 0
          %2072 = vmatprep.subr.bf16.mxu0 0
          %2073 = vmatpush1.bf16.msra.mxu0 0
          %2074 = vmatprep.subr.bf16.mxu0 0
          %2075 = vmatpush1.bf16.msra.mxu0 0
          %2076 = vmatprep.subr.bf16.mxu0 %v2011
          %2077 = vmatpush1.bf16.msra.mxu0 %v2008
          %2078 = vmatprep.subr.bf16.mxu0 %v1959
          %2079 = vmatpush1.bf16.msra.mxu0 %v1958
          %2080 = vmatprep.subr.bf16.mxu0 0
          %2081 = vmatpush2.bf16.msra.mxu0 0
          %2082 = vmatprep.subr.bf16.mxu0 0
          %2083 = vmatpush2.bf16.msra.mxu0 0
          %2084 = vmatprep.subr.bf16.mxu0 0
          %2085 = vmatpush2.bf16.msra.mxu0 0
          %2086 = vmatprep.subr.bf16.mxu0 0
          %2087 = vmatpush2.bf16.msra.mxu0 0
          %2088 = vmatprep.subr.bf16.mxu0 0
          %2089 = vmatpush2.bf16.msra.mxu0 0
          %2090 = vmatprep.subr.bf16.mxu0 0
          %2091 = vmatpush2.bf16.msra.mxu0 0
          %2092 = vmatprep.subr.bf16.mxu0 0
          %2093 = vmatpush2.bf16.msra.mxu0 0
          %2094 = vmatprep.subr.bf16.mxu0 0
          %2095 = vmatpush2.bf16.msra.mxu0 0
          %2096 = vmatprep.mubr.bf16.mxu0 0
          %2097 = vmatmul.mubr.bf16.gmra.mxu0 %v1996
          %v2098 = vpop.f32.mrf.mxu0
          %v2099 = vadd.f32 %v1975, %v2098
          %v2100 = vpop.f32.mrf.mxu0
          %v2101 = vadd.f32 %v1975, %v2100
          %v2102 = vpop.f32.mrf.mxu0
          %v2103 = vadd.f32 %v1980, %v2102
          %v2104 = vpop.f32.mrf.mxu0
          %v2105 = vadd.f32 %v1980, %v2104
          %2106 = vmatprep.mubr.bf16.mxu0 0
          %2107 = vmatmul.mubr.bf16.gmra.mxu0 %v1999
          %v2108 = vpop.f32.mrf.mxu0
          %v2109 = vadd.f32 %v1985, %v2108
          %v2110 = vpop.f32.mrf.mxu0
          %v2111 = vadd.f32 %v1985, %v2110
          %v2112 = vpop.f32.mrf.mxu0
          %v2113 = vpop.f32.mrf.mxu0
          %2114 = vdwg.mxu0
          %v2115 = vmul.f32 %v2048, 0.5
          %v2116 = vmul.f32 %v2050, 0.5
          %v2117 = vmul.f32 %v2099, 0.5
          %v2118 = vmul.f32 %v2101, 0.5
          %v2119 = vmul.f32 %v2052, 0.5
          %v2120 = vmul.f32 %v2054, 0.5
          %v2121 = vmul.f32 %v2103, 0.5
          %v2122 = vmul.f32 %v2105, 0.5
          %v2123 = vmul.f32 %v2058, 0.5
          %v2124 = vmul.f32 %v2060, 0.5
          %v2125 = vmul.f32 %v2109, 0.5
          %v2126 = vmul.f32 %v2111, 0.5
          %v2127 = vtanh.pop %v2115
          %v2128 = vtanh.pop %v2116
          %v2129 = vtanh.pop %v2117
          %v2130 = vtanh.pop %v2118
          %v2131 = vtanh.pop %v2119
          %v2132 = vtanh.pop %v2120
          %v2133 = vtanh.pop %v2121
          %v2134 = vtanh.pop %v2122
          %v2135 = vtanh.pop %v2123
          %v2136 = vtanh.pop %v2124
          %v2137 = vtanh.pop %v2125
          %v2138 = vtanh.pop %v2126
          %v2139 = vadd.f32 %v2127, 1.0
          %v2140 = vadd.f32 %v2128, 1.0
          %v2141 = vadd.f32 %v2129, 1.0
          %v2142 = vadd.f32 %v2130, 1.0
          %v2143 = vadd.f32 %v2131, 1.0
          %v2144 = vadd.f32 %v2132, 1.0
          %v2145 = vadd.f32 %v2133, 1.0
          %v2146 = vadd.f32 %v2134, 1.0
          %v2147 = vadd.f32 %v2135, 1.0
          %v2148 = vadd.f32 %v2136, 1.0
          %v2149 = vadd.f32 %v2137, 1.0
          %v2150 = vadd.f32 %v2138, 1.0
          %v2151 = vmul.f32 %v2115, %v2139
          %v2152 = vmul.f32 %v2116, %v2140
          %v2153 = vmul.f32 %v2117, %v2141
          %v2154 = vmul.f32 %v2118, %v2142
          %v2155 = vmul.f32 %v2119, %v2143
          %v2156 = vmul.f32 %v2120, %v2144
          %v2157 = vmul.f32 %v2121, %v2145
          %v2158 = vmul.f32 %v2122, %v2146
          %v2159 = vmul.f32 %v2123, %v2147
          %v2160 = vmul.f32 %v2124, %v2148
          %v2161 = vmul.f32 %v2125, %v2149
          %v2162 = vmul.f32 %v2126, %v2150
          %v2163 = vpack.c.bf16 %v2155, %v2151
          %v2164 = vpack.c.bf16 %v2156, %v2152
          %v2165 = vpack.c.bf16 %v2157, %v2153
          %v2166 = vpack.c.bf16 %v2158, %v2154
          %v2167 = vpack.c.bf16 %v2159, %v2159
          %v2168 = vpack.c.bf16 %v2160, %v2160
          %v2169 = vpack.c.bf16 %v2161, %v2161
          %v2170 = vpack.c.bf16 %v2162, %v2162
          %v2171 = vld [vmem:[%s5] sm:$0x1]
          %v2172 = vld [vmem:[#allocation2] sm:$0x1]
          %2174 = vset.pattern.permute.xlu0 0
          %2175 = vperm.xlu0 %2174, %v2172
          %v2176 = vpop.permute.xlu0 %2175
          %v2178 = vlaneseq
          %v2179 = vshrl.u32 %v2178, 7
          %v2180 = vsub.s32 0, %v2179
          %v2181 = vrot.slane %v2176, %v2180
          %v2183 = vsel %vm545, %v2171, 0
          %v2186 = vsel %vm343, %v2167, 0
          %v2189 = vsel %vm343, %v2168, 0
          %v2192 = vsel %vm343, %v2169, 0
          %v2195 = vsel %vm343, %v2170, 0
          %2197 = vmatprep.subr.bf16.mxu0 0
          %2198 = vmatpush1.bf16.msra.mxu0 0
          %2199 = vmatprep.subr.bf16.mxu0 0
          %2200 = vmatpush1.bf16.msra.mxu0 0
          %2201 = vmatprep.subr.bf16.mxu0 0
          %2202 = vmatpush1.bf16.msra.mxu0 0
          %2203 = vmatprep.subr.bf16.mxu0 0
          %2204 = vmatpush1.bf16.msra.mxu0 0
          %2205 = vmatprep.subr.bf16.mxu0 0
          %2206 = vmatpush1.bf16.msra.mxu0 0
          %2207 = vmatprep.subr.bf16.mxu0 0
          %2208 = vmatpush1.bf16.msra.mxu0 0
          %2209 = vmatprep.subr.bf16.mxu0 %v2189
          %2210 = vmatpush1.bf16.msra.mxu0 %v2186
          %2211 = vmatprep.subr.bf16.mxu0 %v2164
          %2212 = vmatpush1.bf16.msra.mxu0 %v2163
          %2213 = vmatprep.subr.bf16.mxu0 0
          %2214 = vmatpush2.bf16.msra.mxu0 0
          %2215 = vmatprep.subr.bf16.mxu0 0
          %2216 = vmatpush2.bf16.msra.mxu0 0
          %2217 = vmatprep.subr.bf16.mxu0 0
          %2218 = vmatpush2.bf16.msra.mxu0 0
          %2219 = vmatprep.subr.bf16.mxu0 0
          %2220 = vmatpush2.bf16.msra.mxu0 0
          %2221 = vmatprep.subr.bf16.mxu0 0
          %2222 = vmatpush2.bf16.msra.mxu0 0
          %2223 = vmatprep.subr.bf16.mxu0 0
          %2224 = vmatpush2.bf16.msra.mxu0 0
          %2225 = vmatprep.subr.bf16.mxu0 0
          %2226 = vmatpush2.bf16.msra.mxu0 0
          %2227 = vmatprep.subr.bf16.mxu0 0
          %2228 = vmatpush2.bf16.msra.mxu0 0
          %2229 = vmatprep.mubr.bf16.mxu0 0
          %2230 = vmatmul.mubr.bf16.gmra.mxu0 %v2183
          %v2231 = vpop.f32.mrf.mxu0
          %v2232 = vadd.f32 %v2181, %v2231
          %v2233 = vpop.f32.mrf.mxu0
          %v2234 = vadd.f32 %v2181, %v2233
          %v2235 = vpop.f32.mrf.mxu0
          %v2236 = vpop.f32.mrf.mxu0
          %2237 = vdwg.mxu0
          %2238 = vmatprep.subr.bf16.mxu0 0
          %2239 = vmatpush1.bf16.msra.mxu0 0
          %2240 = vmatprep.subr.bf16.mxu0 0
          %2241 = vmatpush1.bf16.msra.mxu0 0
          %2242 = vmatprep.subr.bf16.mxu0 0
          %2243 = vmatpush1.bf16.msra.mxu0 0
          %2244 = vmatprep.subr.bf16.mxu0 0
          %2245 = vmatpush1.bf16.msra.mxu0 0
          %2246 = vmatprep.subr.bf16.mxu0 0
          %2247 = vmatpush1.bf16.msra.mxu0 0
          %2248 = vmatprep.subr.bf16.mxu0 0
          %2249 = vmatpush1.bf16.msra.mxu0 0
          %2250 = vmatprep.subr.bf16.mxu0 %v2195
          %2251 = vmatpush1.bf16.msra.mxu0 %v2192
          %2252 = vmatprep.subr.bf16.mxu0 %v2166
          %2253 = vmatpush1.bf16.msra.mxu0 %v2165
          %2254 = vmatprep.subr.bf16.mxu0 0
          %2255 = vmatpush2.bf16.msra.mxu0 0
          %2256 = vmatprep.subr.bf16.mxu0 0
          %2257 = vmatpush2.bf16.msra.mxu0 0
          %2258 = vmatprep.subr.bf16.mxu0 0
          %2259 = vmatpush2.bf16.msra.mxu0 0
          %2260 = vmatprep.subr.bf16.mxu0 0
          %2261 = vmatpush2.bf16.msra.mxu0 0
          %2262 = vmatprep.subr.bf16.mxu0 0
          %2263 = vmatpush2.bf16.msra.mxu0 0
          %2264 = vmatprep.subr.bf16.mxu0 0
          %2265 = vmatpush2.bf16.msra.mxu0 0
          %2266 = vmatprep.subr.bf16.mxu0 0
          %2267 = vmatpush2.bf16.msra.mxu0 0
          %2268 = vmatprep.subr.bf16.mxu0 0
          %2269 = vmatpush2.bf16.msra.mxu0 0
          %2270 = vmatprep.mubr.bf16.mxu0 0
          %2271 = vmatmul.mubr.bf16.gmra.mxu0 %v2183
          %v2272 = vpop.f32.mrf.mxu0
          %v2273 = vadd.f32 %v2181, %v2272
          %v2274 = vpop.f32.mrf.mxu0
          %v2275 = vadd.f32 %v2181, %v2274
          %v2276 = vpop.f32.mrf.mxu0
          %v2277 = vpop.f32.mrf.mxu0
          %2278 = vdwg.mxu0
          %v2283 = vcombine.low %v2232, %v2234
          %v2284 = vcombine.low %v2273, %v2275
          %v2286 = vunpack.c.l.s4 1966171168
          %v2287 = vunpack.c.0.s8 %v2286
          %v2288 = vlaneseq
          %v2289 = vshrl.u32 %v2288, 7
          %v2290 = vsub.s32 %v2287, %v2289
          %v2291 = vrot.slane %v2283, %v2290
          %v2293 = vunpack.c.l.s4 1966171168
          %v2294 = vunpack.c.0.s8 %v2293
          %v2295 = vlaneseq
          %v2296 = vshrl.u32 %v2295, 7
          %v2297 = vsub.s32 %v2294, %v2296
          %v2298 = vrot.slane %v2284, %v2297
          %v2299 = vcombine.low %v2291, %v2298
          %v2301 = vunpack.c.l.s4 1966171168
          %v2302 = vunpack.c.0.s8 %v2301
          %v2303 = vlaneseq
          %v2304 = vshrl.u32 %v2303, 7
          %v2305 = vsub.s32 %v2302, %v2304
          %v2306 = vrot.slane %v2299, %v2305
          %s2308 = scalar_lea.vmem %s274, %s290 [#allocation3]
          %v2309 = vlaneseq
          %vm2310 = vcmp.ge.s32.totalorder %v2309, 0
          %vm2311 = vcmp.lt.s32.totalorder %v2309, 512
          %vm2312 = vmand %vm2310, %vm2311
          %2313 = vst.msk [vmem:[%s2308] sm:$0xf] %vm2312, %v2306
        $region53: #{tpu_custom_call.1} parent=47 // loop_footer
          %s288 = sadd.s32 1, %s284
        $region54: #{tpu_custom_call.1} parent=47 // loop_footer_branch
          %283 = sbr.rel target = $region50
        $region55: #{tpu_custom_call.1} parent=47 // loop_exit
          _
        %s2314 = sand.u32 %s183, 1
        %s2315 = scalar_lea.sflag [#allocation4], %s2314
        %s2316 = sand.u32 %s183, 1
        %s2317 = smul.addr %s2316, 20
        %s2318 = scalar_lea.vmem [#allocation3], %s2317
        // Predicated region
        $region56: #{tpu_custom_call.1} parent=47 // pred_check
          %p2319 = pneg %p193
        $region57: #{tpu_custom_call.1} parent=47 // pred_check_branch
          %2321 = sbr.rel (%p2319) target = $region59
        $region58: #{tpu_custom_call.1} parent=47 // pred_region
          %s2322 = smul.u32 20, %s23
          %s2324 = ssub.s32 320, 320
          %2325 = vsyncadd %s2315, %s2324
          %s2326 = smul.addr %s2322, 16
          %s2327 = scalar_lea.hbm %s7, %s2326
          %s2329 = sshll.u32 %s2318, 4
          %s2330 = int_to_ptr.vmem [resolvable:$true] %s2329
          %2332 = dma.vmem_to_hbm [thread:$0]  %s2330, 320, %s2327, %s2315
        $region59: #{tpu_custom_call.1} parent=47 // pred_fallthru
          _
      $region48: #{tpu_custom_call.1} parent=5 // pred_fallthru
        _
      %p2333 = scmp.le.s32.totalorder 2, %s18
      // Predicated region
      $region60: #{tpu_custom_call.1} parent=5 // pred_check
        %p2334 = pneg %p2333
      $region61: #{tpu_custom_call.1} parent=5 // pred_check_branch
        %2336 = sbr.rel (%p2334) target = $region63
      $region62: #{tpu_custom_call.1} parent=5 // pred_region
        %s2337 = ssub.s32 %s18, 2
        // Predicated region
        $region64: #{tpu_custom_call.1} parent=62 // pred_check
          %p2338 = pneg %p199
        $region65: #{tpu_custom_call.1} parent=62 // pred_check_branch
          %2340 = sbr.rel (%p2338) target = $region67
        $region66: #{tpu_custom_call.1} parent=62 // pred_region
          %s2341 = sand.u32 %s184, 1
          %s2342 = scalar_lea.sflag [#allocation4], %s2341
          %s2343 = sand.u32 %s184, 1
          %s2344 = smul.addr %s2343, 20
          %s2345 = scalar_lea.vmem [#allocation3], %s2344
          %2346 = dma.done %s2342, 320
        $region67: #{tpu_custom_call.1} parent=62 // pred_fallthru
          _
      $region63: #{tpu_custom_call.1} parent=5 // pred_fallthru
        _
    $region6: #{tpu_custom_call.1} parent=1 // loop_footer
      %s22 = sadd.s32 1, %s18
    $region7: #{tpu_custom_call.1} parent=1 // loop_footer_branch
      %17 = sbr.rel target = $region3
    $region8: #{tpu_custom_call.1} parent=1 // loop_exit
      _
    %2347 = vsyncpa [#allocation4], 1
    %s2348 = scalar_lea.sflag [#allocation4], 1
    %2349 = vsyncpa %s2348, 1

</llo_original>
